<compile_context>
chip_gen: v5e
topology: v5e:2x2
jax: 0.10.0
libtpu: 0.0.40
codegen_flags: <defaults>
</compile_context>

<pallas_src>
import jax
import jax.numpy as jnp
from jax.experimental import pallas as pl
from jax.experimental.pallas import tpu as pltpu


# ----------------------------------------------------------------------------
# Fused kernel: all LSTM layers + linear head + log_softmax for a batch block.
# ----------------------------------------------------------------------------
def make_seq_kernel(*, T, E, H, L, Cp):
    G = 4 * H

    def kernel(*refs):
        # refs = (x, h0, c0, [wih_t, whh_t, bias] * L, head_w_t, head_b, out)
        x_ref, h0_ref, c0_ref = refs[0], refs[1], refs[2]
        w_refs = refs[3:3 + 3 * L]
        wh_ref = refs[3 + 3 * L]          # (H, Cp)  pre-transposed, zero-padded
        bh_ref = refs[4 + 3 * L]          # (1, Cp)  pad columns = -1e30
        o_ref = refs[5 + 3 * L]           # (Bb, T, Cp)

        def lstm_cell(gates, c):
            # gates: (Bb, 4H) pre-activations in PyTorch order [i, f, g, o].
            # One sigmoid + one tanh over the full 128-lane gate vector (2 EUP
            # pushes instead of 4), then 32-lane slices.
            sig = jax.nn.sigmoid(gates)
            th = jnp.tanh(gates)
            i_g = sig[:, 0 * H:1 * H]
            f_g = sig[:, 1 * H:2 * H]
            o_g = sig[:, 3 * H:4 * H]
            g_g = th[:, 2 * H:3 * H]
            c_new = f_g * c + i_g * g_g
            h_new = o_g * jnp.tanh(c_new)
            return h_new, c_new

        # Layer-0 inputs for every timestep (static slices; no recurrent dependence,
        # so these loads/projections are off the serial critical path).
        xs = [x_ref[:, t, :] for t in range(T)]          # T x (Bb, E)

        for l in range(L):                # num_layers is small & static -> Python unroll
            wih_t = w_refs[3 * l][...]    # (Din, 4H)  pre-transposed
            whh_t = w_refs[3 * l + 1][...]  # (H, 4H)
            bias = w_refs[3 * l + 2][...]   # (1, 4H) = b_ih + b_hh

            h = h0_ref[:, l, :]           # (Bb, H)
            c = c0_ref[:, l, :]           # (Bb, H)
            hs = []
            for t in range(T):            # fully unrolled; T*L small
                # x-side dot has no dependence on the recurrence; only the h-side
                # dot + gates are on the dependent chain (wavefront DAG across layers).
                gates = (jnp.dot(xs[t], wih_t, preferred_element_type=jnp.float32)
                         + jnp.dot(h, whh_t, preferred_element_type=jnp.float32)
                         + bias)                                        # (Bb, 4H)
                h, c = lstm_cell(gates, c)
                hs.append(h)
            xs = hs                       # next layer consumes SSA values directly
            # TODO(synk): inter-layer dropout omitted (dropout inactive in eval mode).

        # hidden2tag + log_softmax, lane-dense (Cp = multiple of 128).  Computed per
        # timestep (each z_t depends only on h_t, so it is off the recurrent chain);
        # for large T batch this into one (B*T, H) @ (H, Cp) GEMM instead.
        head_w = wh_ref[...]
        head_b = bh_ref[...]
        for t in range(T):
            z = jnp.dot(xs[t], head_w,
                        preferred_element_type=jnp.float32) + head_b    # (Bb, Cp)
            m = jnp.max(z, axis=-1, keepdims=True)
            s = z - m
            lse = jnp.log(jnp.sum(jnp.exp(s), axis=-1, keepdims=True))
            o_ref[:, t, :] = (s - lse).astype(o_ref.dtype)

    return kernel


# ----------------------------------------------------------------------------
# Full SeqModel forward.
# ----------------------------------------------------------------------------
def seq_model_forward(batch_eventid, params, *, batch_blocks=1):
    """batch_eventid: (B, T) int32 token ids. Returns (B*T, category_num) log-probs.

    batch_blocks: 1 collapses the grid (right for single-TC v5e/v6e and tiny B);
    on v7x set batch_blocks=2 to shard the independent per-row recurrences across
    the two TensorCores ("parallel" grid axis).
    """
    B, T = batch_eventid.shape
    word_emb = params["word_emb"]
    C, E = word_emb.shape
    layers = params["lstm"]
    L = len(layers)
    H = layers[0]["whh_t"].shape[0]
    G = 4 * H
    Cp = params["head_w_t"].shape[1]
    assert B % batch_blocks == 0
    Bb = B // batch_blocks

    # TODO(synk): embedding gather left in plain JAX; at production T/E fuse it via
    # PrefetchScalarGridSpec(num_scalar_prefetch=1) + an in-kernel gather.
    x = word_emb[batch_eventid]                                    # (B, T, E)

    h0 = jnp.stack([p["h0"] for p in layers], axis=1)              # (B, L, H)
    c0 = jnp.stack([p["c0"] for p in layers], axis=1)              # (B, L, H)

    inputs = [x, h0, c0]
    in_specs = [
        pl.BlockSpec((Bb, T, E), lambda g: (g, 0, 0)),             # batch block of input
        pl.BlockSpec((Bb, L, H), lambda g: (g, 0, 0)),             # batch block of h0
        pl.BlockSpec((Bb, L, H), lambda g: (g, 0, 0)),             # batch block of c0
    ]
    for p in layers:
        din = p["wih_t"].shape[0]
        inputs += [p["wih_t"], p["whh_t"], p["bias"]]
        in_specs += [
            pl.BlockSpec((din, G), lambda g: (0, 0)),              # W_ih^T
            pl.BlockSpec((H, G), lambda g: (0, 0)),                # W_hh^T
            pl.BlockSpec((1, G), lambda g: (0, 0)),                # b_ih + b_hh
        ]
    inputs += [params["head_w_t"], params["head_b"]]
    in_specs += [
        pl.BlockSpec((H, Cp), lambda g: (0, 0)),                   # hidden2tag W^T (padded)
        pl.BlockSpec((1, Cp), lambda g: (0, 0)),                   # hidden2tag b  (padded)
    ]

    kernel = make_seq_kernel(T=T, E=E, H=H, L=L, Cp=Cp)

    # For scaled-up configs (large T/H) set vmem_limit_bytes explicitly and cast the
    # GEMM operands to bf16 on v6e/v7x; unnecessary at these toy sizes.
    out = pl.pallas_call(
        kernel,
        out_shape=jax.ShapeDtypeStruct((B, T, Cp), jnp.float32),
        grid_spec=pltpu.PrefetchScalarGridSpec(
            num_scalar_prefetch=0,
            grid=(batch_blocks,),
            in_specs=in_specs,
            out_specs=pl.BlockSpec((Bb, T, Cp), lambda g: (g, 0, 0)),
        ),
        compiler_params=pltpu.CompilerParams(
            dimension_semantics=("parallel",)),
    )(*inputs)

    # Batch-first flatten (matches lstm_out.contiguous().view(-1, H) row order),
    # then drop the lane-padding columns.
    return out.reshape(B * T, Cp)[:, :C]


# ----------------------------------------------------------------------------
# Parameter init (kernel-ready: pre-transposed / lane-padded weights).
# ----------------------------------------------------------------------------
def init_params(key, *, category_num, embedding_dim, hidden_dim, num_layers, batch_size):
    C, E, H = category_num, embedding_dim, hidden_dim
    Cp = ((C + 127) // 128) * 128
    keys = jax.random.split(key, 3 + 6 * num_layers)
    k = iter(keys)
    scale = 1.0 / jnp.sqrt(hidden_dim)

    word_emb = jax.random.normal(next(k), (C, E), jnp.float32)

    # hidden2tag Linear: stored pre-transposed (H, Cp); pad logits forced to -1e30 via bias.
    w_head = jax.random.uniform(next(k), (C, H), jnp.float32, -scale, scale)
    b_head = jax.random.uniform(next(k), (C,), jnp.float32, -scale, scale)
    head_w_t = jnp.zeros((H, Cp), jnp.float32).at[:, :C].set(w_head.T)
    head_b = jnp.full((1, Cp), -1e30, jnp.float32).at[0, :C].set(b_head)

    lstm = []
    for layer in range(num_layers):
        din = E if layer == 0 else H
        w_ih = jax.random.uniform(next(k), (4 * H, din), jnp.float32, -scale, scale)
        w_hh = jax.random.uniform(next(k), (4 * H, H), jnp.float32, -scale, scale)
        b_ih = jax.random.uniform(next(k), (1, 4 * H), jnp.float32, -scale, scale)
        b_hh = jax.random.uniform(next(k), (1, 4 * H), jnp.float32, -scale, scale)
        # init_hidden(): random initial hidden / cell state (per the PyTorch module).
        h0 = jax.random.normal(next(k), (batch_size, H), jnp.float32)
        c0 = jax.random.normal(next(k), (batch_size, H), jnp.float32)
        lstm.append({
            "wih_t": w_ih.T,            # (din, 4H)  pre-transposed, lane-dense
            "whh_t": w_hh.T,            # (H, 4H)
            "bias": b_ih + b_hh,        # (1, 4H)
            "h0": h0, "c0": c0,
        })
    # TODO(synk): bidirectional branch not implemented (hidden2tag expects hidden_dim
    # features, i.e. the module is used unidirectionally here).
    return {"word_emb": word_emb, "head_w_t": head_w_t, "head_b": head_b, "lstm": lstm}


# ----------------------------------------------------------------------------
# Pure-JAX reference (for a correctness check in __main__).
# ----------------------------------------------------------------------------
def seq_model_reference(batch_eventid, params):
    x = params["word_emb"][batch_eventid]                          # (B, T, E)
    B, T, _ = x.shape
    layers = params["lstm"]
    H = layers[0]["whh_t"].shape[0]
    out = x
    for p in layers:
        h, c = p["h0"], p["c0"]                                    # (B, H)
        hs = []
        for t in range(T):
            g = out[:, t, :] @ p["wih_t"] + h @ p["whh_t"] + p["bias"]
            i_g = jax.nn.sigmoid(g[:, :H])
            f_g = jax.nn.sigmoid(g[:, H:2 * H])
            g_g = jnp.tanh(g[:, 2 * H:3 * H])
            o_g = jax.nn.sigmoid(g[:, 3 * H:])
            c = f_g * c + i_g * g_g
            h = o_g * jnp.tanh(c)
            hs.append(h)
        out = jnp.stack(hs, axis=1)                                # (B, T, H)
    C = params["word_emb"].shape[0]
    flat = out.reshape(-1, H)
    logits = flat @ params["head_w_t"][:, :C] + params["head_b"][0, :C]
    return jax.nn.log_softmax(logits, axis=-1)


if __name__ == "__main__":
    # Small, module-consistent shapes.
    B, T = 2, 8
    CATEGORY_NUM = 10
    EMBEDDING_DIM = 16
    HIDDEN_DIM = 32
    NUM_LAYERS = 2

    key = jax.random.PRNGKey(0)
    k_params, k_ids = jax.random.split(key)

    params = init_params(k_params,
                         category_num=CATEGORY_NUM,
                         embedding_dim=EMBEDDING_DIM,
                         hidden_dim=HIDDEN_DIM,
                         num_layers=NUM_LAYERS,
                         batch_size=B)

    batch_eventid = jax.random.randint(k_ids, (B, T), 0, CATEGORY_NUM, jnp.int32)

    fwd = jax.jit(seq_model_forward)
    tag_scores = fwd(batch_eventid, params)                        # (B*T, CATEGORY_NUM)
    jax.block_until_ready(tag_scores)

    assert tag_scores.shape == (B * T, CATEGORY_NUM)
    assert bool(jnp.all(jnp.isfinite(tag_scores)))
    # rows of log_softmax should sum (in prob space) to ~1
    assert bool(jnp.allclose(jnp.sum(jnp.exp(tag_scores), axis=-1), 1.0, atol=1e-4))
    # match the pure-JAX reference forward
    ref = seq_model_reference(batch_eventid, params)
    assert bool(jnp.allclose(tag_scores, ref, atol=1e-3, rtol=1e-3))

    print("KERNEL_OK")
</pallas_src>

<mosaic_0001>
module attributes {stable_mosaic.version = 11 : i64} {
  func.func @kernel(%arg0: i32, %arg1: memref<2x8x16xf32, #tpu.memory_space<vmem>>, %arg2: memref<2x2x32xf32, #tpu.memory_space<vmem>>, %arg3: memref<2x2x32xf32, #tpu.memory_space<vmem>>, %arg4: memref<16x128xf32, #tpu.memory_space<vmem>>, %arg5: memref<32x128xf32, #tpu.memory_space<vmem>>, %arg6: memref<1x128xf32, #tpu.memory_space<vmem>>, %arg7: memref<32x128xf32, #tpu.memory_space<vmem>>, %arg8: memref<32x128xf32, #tpu.memory_space<vmem>>, %arg9: memref<1x128xf32, #tpu.memory_space<vmem>>, %arg10: memref<32x128xf32, #tpu.memory_space<vmem>>, %arg11: memref<1x128xf32, #tpu.memory_space<vmem>>, %arg12: memref<2x8x128xf32, #tpu.memory_space<vmem>>) attributes {dimension_semantics = [#tpu.dimension_semantics<parallel>], iteration_bounds = array<i64: 1>, scalar_prefetch = 0 : i64, scratch_operands = 0 : i64, tpu.core_type = #tpu.core_type<tc>, window_params = [{transform_indices = @transform_0, window_bounds = array<i64: 2, 8, 16>}, {transform_indices = @transform_1, window_bounds = array<i64: 2, 2, 32>}, {transform_indices = @transform_2, window_bounds = array<i64: 2, 2, 32>}, {pipeline_mode = #tpu.pipeline_mode<synchronous>, transform_indices = @transform_3, window_bounds = array<i64: 16, 128>}, {pipeline_mode = #tpu.pipeline_mode<synchronous>, transform_indices = @transform_4, window_bounds = array<i64: 32, 128>}, {pipeline_mode = #tpu.pipeline_mode<synchronous>, transform_indices = @transform_5, window_bounds = array<i64: 1, 128>}, {pipeline_mode = #tpu.pipeline_mode<synchronous>, transform_indices = @transform_6, window_bounds = array<i64: 32, 128>}, {pipeline_mode = #tpu.pipeline_mode<synchronous>, transform_indices = @transform_7, window_bounds = array<i64: 32, 128>}, {pipeline_mode = #tpu.pipeline_mode<synchronous>, transform_indices = @transform_8, window_bounds = array<i64: 1, 128>}, {pipeline_mode = #tpu.pipeline_mode<synchronous>, transform_indices = @transform_9, window_bounds = array<i64: 32, 128>}, {pipeline_mode = #tpu.pipeline_mode<synchronous>, transform_indices = @transform_10, window_bounds = array<i64: 1, 128>}, {transform_indices = @transform_11, window_bounds = array<i64: 2, 8, 128>}]} {
    %c0 = arith.constant 0 : index
    %c0_0 = arith.constant 0 : index
    %c0_1 = arith.constant 0 : index
    %0 = vector.load %arg1[%c0, %c0_0, %c0_1] : memref<2x8x16xf32, #tpu.memory_space<vmem>>, vector<2x1x16xf32>
    %1 = vector.shape_cast %0 : vector<2x1x16xf32> to vector<2x16xf32>
    %c0_2 = arith.constant 0 : index
    %c1 = arith.constant 1 : index
    %c0_3 = arith.constant 0 : index
    %2 = vector.load %arg1[%c0_2, %c1, %c0_3] : memref<2x8x16xf32, #tpu.memory_space<vmem>>, vector<2x1x16xf32>
    %3 = vector.shape_cast %2 : vector<2x1x16xf32> to vector<2x16xf32>
    %c0_4 = arith.constant 0 : index
    %c2 = arith.constant 2 : index
    %c0_5 = arith.constant 0 : index
    %4 = vector.load %arg1[%c0_4, %c2, %c0_5] : memref<2x8x16xf32, #tpu.memory_space<vmem>>, vector<2x1x16xf32>
    %5 = vector.shape_cast %4 : vector<2x1x16xf32> to vector<2x16xf32>
    %c0_6 = arith.constant 0 : index
    %c3 = arith.constant 3 : index
    %c0_7 = arith.constant 0 : index
    %6 = vector.load %arg1[%c0_6, %c3, %c0_7] : memref<2x8x16xf32, #tpu.memory_space<vmem>>, vector<2x1x16xf32>
    %7 = vector.shape_cast %6 : vector<2x1x16xf32> to vector<2x16xf32>
    %c0_8 = arith.constant 0 : index
    %c4 = arith.constant 4 : index
    %c0_9 = arith.constant 0 : index
    %8 = vector.load %arg1[%c0_8, %c4, %c0_9] : memref<2x8x16xf32, #tpu.memory_space<vmem>>, vector<2x1x16xf32>
    %9 = vector.shape_cast %8 : vector<2x1x16xf32> to vector<2x16xf32>
    %c0_10 = arith.constant 0 : index
    %c5 = arith.constant 5 : index
    %c0_11 = arith.constant 0 : index
    %10 = vector.load %arg1[%c0_10, %c5, %c0_11] : memref<2x8x16xf32, #tpu.memory_space<vmem>>, vector<2x1x16xf32>
    %11 = vector.shape_cast %10 : vector<2x1x16xf32> to vector<2x16xf32>
    %c0_12 = arith.constant 0 : index
    %c6 = arith.constant 6 : index
    %c0_13 = arith.constant 0 : index
    %12 = vector.load %arg1[%c0_12, %c6, %c0_13] : memref<2x8x16xf32, #tpu.memory_space<vmem>>, vector<2x1x16xf32>
    %13 = vector.shape_cast %12 : vector<2x1x16xf32> to vector<2x16xf32>
    %c0_14 = arith.constant 0 : index
    %c7 = arith.constant 7 : index
    %c0_15 = arith.constant 0 : index
    %14 = vector.load %arg1[%c0_14, %c7, %c0_15] : memref<2x8x16xf32, #tpu.memory_space<vmem>>, vector<2x1x16xf32>
    %15 = vector.shape_cast %14 : vector<2x1x16xf32> to vector<2x16xf32>
    %c0_16 = arith.constant 0 : index
    %c0_17 = arith.constant 0 : index
    %16 = vector.load %arg4[%c0_16, %c0_17] : memref<16x128xf32, #tpu.memory_space<vmem>>, vector<16x128xf32>
    %c0_18 = arith.constant 0 : index
    %c0_19 = arith.constant 0 : index
    %17 = vector.load %arg5[%c0_18, %c0_19] : memref<32x128xf32, #tpu.memory_space<vmem>>, vector<32x128xf32>
    %c0_20 = arith.constant 0 : index
    %c0_21 = arith.constant 0 : index
    %18 = vector.load %arg6[%c0_20, %c0_21] : memref<1x128xf32, #tpu.memory_space<vmem>>, vector<1x128xf32>
    %c0_22 = arith.constant 0 : index
    %c0_23 = arith.constant 0 : index
    %c0_24 = arith.constant 0 : index
    %19 = vector.load %arg2[%c0_22, %c0_23, %c0_24] : memref<2x2x32xf32, #tpu.memory_space<vmem>>, vector<2x1x32xf32>
    %20 = vector.shape_cast %19 : vector<2x1x32xf32> to vector<2x32xf32>
    %c0_25 = arith.constant 0 : index
    %c0_26 = arith.constant 0 : index
    %c0_27 = arith.constant 0 : index
    %21 = vector.load %arg3[%c0_25, %c0_26, %c0_27] : memref<2x2x32xf32, #tpu.memory_space<vmem>>, vector<2x1x32xf32>
    %22 = vector.shape_cast %21 : vector<2x1x32xf32> to vector<2x32xf32>
    %cst = arith.constant dense<0.000000e+00> : vector<2x128xf32>
    %23 = tpu.matmul %1, %16, %cst {dimension_numbers = #tpu.dot_dimension_numbers<[1], [0], [0], [1], [0, 0, 1, 1], [], []>} : vector<2x16xf32>, vector<16x128xf32>, vector<2x128xf32> -> vector<2x128xf32>
    %cst_28 = arith.constant dense<0.000000e+00> : vector<2x128xf32>
    %24 = tpu.matmul %20, %17, %cst_28 {dimension_numbers = #tpu.dot_dimension_numbers<[1], [0], [0], [1], [0, 0, 1, 1], [], []>} : vector<2x32xf32>, vector<32x128xf32>, vector<2x128xf32> -> vector<2x128xf32>
    %25 = arith.addf %23, %24 : vector<2x128xf32>
    %26 = vector.broadcast %18 : vector<1x128xf32> to vector<2x128xf32>
    %27 = arith.addf %25, %26 : vector<2x128xf32>
    %28 = arith.negf %27 : vector<2x128xf32>
    %29 = math.exp %28 : vector<2x128xf32>
    %cst_29 = arith.constant 1.000000e+00 : f32
    %30 = vector.broadcast %cst_29 : f32 to vector<2x128xf32>
    %31 = arith.addf %30, %29 : vector<2x128xf32>
    %32 = arith.divf %30, %31 : vector<2x128xf32>
    %33 = math.tanh %27 : vector<2x128xf32>
    %34 = vector.extract_strided_slice %32 {offsets = [0, 0], sizes = [2, 32], strides = [1, 1]} : vector<2x128xf32> to vector<2x32xf32>
    %35 = vector.extract_strided_slice %32 {offsets = [0, 32], sizes = [2, 32], strides = [1, 1]} : vector<2x128xf32> to vector<2x32xf32>
    %36 = vector.extract_strided_slice %32 {offsets = [0, 96], sizes = [2, 32], strides = [1, 1]} : vector<2x128xf32> to vector<2x32xf32>
    %37 = vector.extract_strided_slice %33 {offsets = [0, 64], sizes = [2, 32], strides = [1, 1]} : vector<2x128xf32> to vector<2x32xf32>
    %38 = arith.mulf %35, %22 : vector<2x32xf32>
    %39 = arith.mulf %34, %37 : vector<2x32xf32>
    %40 = arith.addf %38, %39 : vector<2x32xf32>
    %41 = math.tanh %40 : vector<2x32xf32>
    %42 = arith.mulf %36, %41 : vector<2x32xf32>
    %cst_30 = arith.constant dense<0.000000e+00> : vector<2x128xf32>
    %43 = tpu.matmul %3, %16, %cst_30 {dimension_numbers = #tpu.dot_dimension_numbers<[1], [0], [0], [1], [0, 0, 1, 1], [], []>} : vector<2x16xf32>, vector<16x128xf32>, vector<2x128xf32> -> vector<2x128xf32>
    %cst_31 = arith.constant dense<0.000000e+00> : vector<2x128xf32>
    %44 = tpu.matmul %42, %17, %cst_31 {dimension_numbers = #tpu.dot_dimension_numbers<[1], [0], [0], [1], [0, 0, 1, 1], [], []>} : vector<2x32xf32>, vector<32x128xf32>, vector<2x128xf32> -> vector<2x128xf32>
    %45 = arith.addf %43, %44 : vector<2x128xf32>
    %46 = vector.broadcast %18 : vector<1x128xf32> to vector<2x128xf32>
    %47 = arith.addf %45, %46 : vector<2x128xf32>
    %48 = arith.negf %47 : vector<2x128xf32>
    %49 = math.exp %48 : vector<2x128xf32>
    %cst_32 = arith.constant 1.000000e+00 : f32
    %50 = vector.broadcast %cst_32 : f32 to vector<2x128xf32>
    %51 = arith.addf %50, %49 : vector<2x128xf32>
    %52 = arith.divf %50, %51 : vector<2x128xf32>
    %53 = math.tanh %47 : vector<2x128xf32>
    %54 = vector.extract_strided_slice %52 {offsets = [0, 0], sizes = [2, 32], strides = [1, 1]} : vector<2x128xf32> to vector<2x32xf32>
    %55 = vector.extract_strided_slice %52 {offsets = [0, 32], sizes = [2, 32], strides = [1, 1]} : vector<2x128xf32> to vector<2x32xf32>
    %56 = vector.extract_strided_slice %52 {offsets = [0, 96], sizes = [2, 32], strides = [1, 1]} : vector<2x128xf32> to vector<2x32xf32>
    %57 = vector.extract_strided_slice %53 {offsets = [0, 64], sizes = [2, 32], strides = [1, 1]} : vector<2x128xf32> to vector<2x32xf32>
    %58 = arith.mulf %55, %40 : vector<2x32xf32>
    %59 = arith.mulf %54, %57 : vector<2x32xf32>
    %60 = arith.addf %58, %59 : vector<2x32xf32>
    %61 = math.tanh %60 : vector<2x32xf32>
    %62 = arith.mulf %56, %61 : vector<2x32xf32>
    %cst_33 = arith.constant dense<0.000000e+00> : vector<2x128xf32>
    %63 = tpu.matmul %5, %16, %cst_33 {dimension_numbers = #tpu.dot_dimension_numbers<[1], [0], [0], [1], [0, 0, 1, 1], [], []>} : vector<2x16xf32>, vector<16x128xf32>, vector<2x128xf32> -> vector<2x128xf32>
    %cst_34 = arith.constant dense<0.000000e+00> : vector<2x128xf32>
    %64 = tpu.matmul %62, %17, %cst_34 {dimension_numbers = #tpu.dot_dimension_numbers<[1], [0], [0], [1], [0, 0, 1, 1], [], []>} : vector<2x32xf32>, vector<32x128xf32>, vector<2x128xf32> -> vector<2x128xf32>
    %65 = arith.addf %63, %64 : vector<2x128xf32>
    %66 = vector.broadcast %18 : vector<1x128xf32> to vector<2x128xf32>
    %67 = arith.addf %65, %66 : vector<2x128xf32>
    %68 = arith.negf %67 : vector<2x128xf32>
    %69 = math.exp %68 : vector<2x128xf32>
    %cst_35 = arith.constant 1.000000e+00 : f32
    %70 = vector.broadcast %cst_35 : f32 to vector<2x128xf32>
    %71 = arith.addf %70, %69 : vector<2x128xf32>
    %72 = arith.divf %70, %71 : vector<2x128xf32>
    %73 = math.tanh %67 : vector<2x128xf32>
    %74 = vector.extract_strided_slice %72 {offsets = [0, 0], sizes = [2, 32], strides = [1, 1]} : vector<2x128xf32> to vector<2x32xf32>
    %75 = vector.extract_strided_slice %72 {offsets = [0, 32], sizes = [2, 32], strides = [1, 1]} : vector<2x128xf32> to vector<2x32xf32>
    %76 = vector.extract_strided_slice %72 {offsets = [0, 96], sizes = [2, 32], strides = [1, 1]} : vector<2x128xf32> to vector<2x32xf32>
    %77 = vector.extract_strided_slice %73 {offsets = [0, 64], sizes = [2, 32], strides = [1, 1]} : vector<2x128xf32> to vector<2x32xf32>
    %78 = arith.mulf %75, %60 : vector<2x32xf32>
    %79 = arith.mulf %74, %77 : vector<2x32xf32>
    %80 = arith.addf %78, %79 : vector<2x32xf32>
    %81 = math.tanh %80 : vector<2x32xf32>
    %82 = arith.mulf %76, %81 : vector<2x32xf32>
    %cst_36 = arith.constant dense<0.000000e+00> : vector<2x128xf32>
    %83 = tpu.matmul %7, %16, %cst_36 {dimension_numbers = #tpu.dot_dimension_numbers<[1], [0], [0], [1], [0, 0, 1, 1], [], []>} : vector<2x16xf32>, vector<16x128xf32>, vector<2x128xf32> -> vector<2x128xf32>
    %cst_37 = arith.constant dense<0.000000e+00> : vector<2x128xf32>
    %84 = tpu.matmul %82, %17, %cst_37 {dimension_numbers = #tpu.dot_dimension_numbers<[1], [0], [0], [1], [0, 0, 1, 1], [], []>} : vector<2x32xf32>, vector<32x128xf32>, vector<2x128xf32> -> vector<2x128xf32>
    %85 = arith.addf %83, %84 : vector<2x128xf32>
    %86 = vector.broadcast %18 : vector<1x128xf32> to vector<2x128xf32>
    %87 = arith.addf %85, %86 : vector<2x128xf32>
    %88 = arith.negf %87 : vector<2x128xf32>
    %89 = math.exp %88 : vector<2x128xf32>
    %cst_38 = arith.constant 1.000000e+00 : f32
    %90 = vector.broadcast %cst_38 : f32 to vector<2x128xf32>
    %91 = arith.addf %90, %89 : vector<2x128xf32>
    %92 = arith.divf %90, %91 : vector<2x128xf32>
    %93 = math.tanh %87 : vector<2x128xf32>
    %94 = vector.extract_strided_slice %92 {offsets = [0, 0], sizes = [2, 32], strides = [1, 1]} : vector<2x128xf32> to vector<2x32xf32>
    %95 = vector.extract_strided_slice %92 {offsets = [0, 32], sizes = [2, 32], strides = [1, 1]} : vector<2x128xf32> to vector<2x32xf32>
    %96 = vector.extract_strided_slice %92 {offsets = [0, 96], sizes = [2, 32], strides = [1, 1]} : vector<2x128xf32> to vector<2x32xf32>
    %97 = vector.extract_strided_slice %93 {offsets = [0, 64], sizes = [2, 32], strides = [1, 1]} : vector<2x128xf32> to vector<2x32xf32>
    %98 = arith.mulf %95, %80 : vector<2x32xf32>
    %99 = arith.mulf %94, %97 : vector<2x32xf32>
    %100 = arith.addf %98, %99 : vector<2x32xf32>
    %101 = math.tanh %100 : vector<2x32xf32>
    %102 = arith.mulf %96, %101 : vector<2x32xf32>
    %cst_39 = arith.constant dense<0.000000e+00> : vector<2x128xf32>
    %103 = tpu.matmul %9, %16, %cst_39 {dimension_numbers = #tpu.dot_dimension_numbers<[1], [0], [0], [1], [0, 0, 1, 1], [], []>} : vector<2x16xf32>, vector<16x128xf32>, vector<2x128xf32> -> vector<2x128xf32>
    %cst_40 = arith.constant dense<0.000000e+00> : vector<2x128xf32>
    %104 = tpu.matmul %102, %17, %cst_40 {dimension_numbers = #tpu.dot_dimension_numbers<[1], [0], [0], [1], [0, 0, 1, 1], [], []>} : vector<2x32xf32>, vector<32x128xf32>, vector<2x128xf32> -> vector<2x128xf32>
    %105 = arith.addf %103, %104 : vector<2x128xf32>
    %106 = vector.broadcast %18 : vector<1x128xf32> to vector<2x128xf32>
    %107 = arith.addf %105, %106 : vector<2x128xf32>
    %108 = arith.negf %107 : vector<2x128xf32>
    %109 = math.exp %108 : vector<2x128xf32>
    %cst_41 = arith.constant 1.000000e+00 : f32
    %110 = vector.broadcast %cst_41 : f32 to vector<2x128xf32>
    %111 = arith.addf %110, %109 : vector<2x128xf32>
    %112 = arith.divf %110, %111 : vector<2x128xf32>
    %113 = math.tanh %107 : vector<2x128xf32>
    %114 = vector.extract_strided_slice %112 {offsets = [0, 0], sizes = [2, 32], strides = [1, 1]} : vector<2x128xf32> to vector<2x32xf32>
    %115 = vector.extract_strided_slice %112 {offsets = [0, 32], sizes = [2, 32], strides = [1, 1]} : vector<2x128xf32> to vector<2x32xf32>
    %116 = vector.extract_strided_slice %112 {offsets = [0, 96], sizes = [2, 32], strides = [1, 1]} : vector<2x128xf32> to vector<2x32xf32>
    %117 = vector.extract_strided_slice %113 {offsets = [0, 64], sizes = [2, 32], strides = [1, 1]} : vector<2x128xf32> to vector<2x32xf32>
    %118 = arith.mulf %115, %100 : vector<2x32xf32>
    %119 = arith.mulf %114, %117 : vector<2x32xf32>
    %120 = arith.addf %118, %119 : vector<2x32xf32>
    %121 = math.tanh %120 : vector<2x32xf32>
    %122 = arith.mulf %116, %121 : vector<2x32xf32>
    %cst_42 = arith.constant dense<0.000000e+00> : vector<2x128xf32>
    %123 = tpu.matmul %11, %16, %cst_42 {dimension_numbers = #tpu.dot_dimension_numbers<[1], [0], [0], [1], [0, 0, 1, 1], [], []>} : vector<2x16xf32>, vector<16x128xf32>, vector<2x128xf32> -> vector<2x128xf32>
    %cst_43 = arith.constant dense<0.000000e+00> : vector<2x128xf32>
    %124 = tpu.matmul %122, %17, %cst_43 {dimension_numbers = #tpu.dot_dimension_numbers<[1], [0], [0], [1], [0, 0, 1, 1], [], []>} : vector<2x32xf32>, vector<32x128xf32>, vector<2x128xf32> -> vector<2x128xf32>
    %125 = arith.addf %123, %124 : vector<2x128xf32>
    %126 = vector.broadcast %18 : vector<1x128xf32> to vector<2x128xf32>
    %127 = arith.addf %125, %126 : vector<2x128xf32>
    %128 = arith.negf %127 : vector<2x128xf32>
    %129 = math.exp %128 : vector<2x128xf32>
    %cst_44 = arith.constant 1.000000e+00 : f32
    %130 = vector.broadcast %cst_44 : f32 to vector<2x128xf32>
    %131 = arith.addf %130, %129 : vector<2x128xf32>
    %132 = arith.divf %130, %131 : vector<2x128xf32>
    %133 = math.tanh %127 : vector<2x128xf32>
    %134 = vector.extract_strided_slice %132 {offsets = [0, 0], sizes = [2, 32], strides = [1, 1]} : vector<2x128xf32> to vector<2x32xf32>
    %135 = vector.extract_strided_slice %132 {offsets = [0, 32], sizes = [2, 32], strides = [1, 1]} : vector<2x128xf32> to vector<2x32xf32>
    %136 = vector.extract_strided_slice %132 {offsets = [0, 96], sizes = [2, 32], strides = [1, 1]} : vector<2x128xf32> to vector<2x32xf32>
    %137 = vector.extract_strided_slice %133 {offsets = [0, 64], sizes = [2, 32], strides = [1, 1]} : vector<2x128xf32> to vector<2x32xf32>
    %138 = arith.mulf %135, %120 : vector<2x32xf32>
    %139 = arith.mulf %134, %137 : vector<2x32xf32>
    %140 = arith.addf %138, %139 : vector<2x32xf32>
    %141 = math.tanh %140 : vector<2x32xf32>
    %142 = arith.mulf %136, %141 : vector<2x32xf32>
    %cst_45 = arith.constant dense<0.000000e+00> : vector<2x128xf32>
    %143 = tpu.matmul %13, %16, %cst_45 {dimension_numbers = #tpu.dot_dimension_numbers<[1], [0], [0], [1], [0, 0, 1, 1], [], []>} : vector<2x16xf32>, vector<16x128xf32>, vector<2x128xf32> -> vector<2x128xf32>
    %cst_46 = arith.constant dense<0.000000e+00> : vector<2x128xf32>
    %144 = tpu.matmul %142, %17, %cst_46 {dimension_numbers = #tpu.dot_dimension_numbers<[1], [0], [0], [1], [0, 0, 1, 1], [], []>} : vector<2x32xf32>, vector<32x128xf32>, vector<2x128xf32> -> vector<2x128xf32>
    %145 = arith.addf %143, %144 : vector<2x128xf32>
    %146 = vector.broadcast %18 : vector<1x128xf32> to vector<2x128xf32>
    %147 = arith.addf %145, %146 : vector<2x128xf32>
    %148 = arith.negf %147 : vector<2x128xf32>
    %149 = math.exp %148 : vector<2x128xf32>
    %cst_47 = arith.constant 1.000000e+00 : f32
    %150 = vector.broadcast %cst_47 : f32 to vector<2x128xf32>
    %151 = arith.addf %150, %149 : vector<2x128xf32>
    %152 = arith.divf %150, %151 : vector<2x128xf32>
    %153 = math.tanh %147 : vector<2x128xf32>
    %154 = vector.extract_strided_slice %152 {offsets = [0, 0], sizes = [2, 32], strides = [1, 1]} : vector<2x128xf32> to vector<2x32xf32>
    %155 = vector.extract_strided_slice %152 {offsets = [0, 32], sizes = [2, 32], strides = [1, 1]} : vector<2x128xf32> to vector<2x32xf32>
    %156 = vector.extract_strided_slice %152 {offsets = [0, 96], sizes = [2, 32], strides = [1, 1]} : vector<2x128xf32> to vector<2x32xf32>
    %157 = vector.extract_strided_slice %153 {offsets = [0, 64], sizes = [2, 32], strides = [1, 1]} : vector<2x128xf32> to vector<2x32xf32>
    %158 = arith.mulf %155, %140 : vector<2x32xf32>
    %159 = arith.mulf %154, %157 : vector<2x32xf32>
    %160 = arith.addf %158, %159 : vector<2x32xf32>
    %161 = math.tanh %160 : vector<2x32xf32>
    %162 = arith.mulf %156, %161 : vector<2x32xf32>
    %cst_48 = arith.constant dense<0.000000e+00> : vector<2x128xf32>
    %163 = tpu.matmul %15, %16, %cst_48 {dimension_numbers = #tpu.dot_dimension_numbers<[1], [0], [0], [1], [0, 0, 1, 1], [], []>} : vector<2x16xf32>, vector<16x128xf32>, vector<2x128xf32> -> vector<2x128xf32>
    %cst_49 = arith.constant dense<0.000000e+00> : vector<2x128xf32>
    %164 = tpu.matmul %162, %17, %cst_49 {dimension_numbers = #tpu.dot_dimension_numbers<[1], [0], [0], [1], [0, 0, 1, 1], [], []>} : vector<2x32xf32>, vector<32x128xf32>, vector<2x128xf32> -> vector<2x128xf32>
    %165 = arith.addf %163, %164 : vector<2x128xf32>
    %166 = vector.broadcast %18 : vector<1x128xf32> to vector<2x128xf32>
    %167 = arith.addf %165, %166 : vector<2x128xf32>
    %168 = arith.negf %167 : vector<2x128xf32>
    %169 = math.exp %168 : vector<2x128xf32>
    %cst_50 = arith.constant 1.000000e+00 : f32
    %170 = vector.broadcast %cst_50 : f32 to vector<2x128xf32>
    %171 = arith.addf %170, %169 : vector<2x128xf32>
    %172 = arith.divf %170, %171 : vector<2x128xf32>
    %173 = math.tanh %167 : vector<2x128xf32>
    %174 = vector.extract_strided_slice %172 {offsets = [0, 0], sizes = [2, 32], strides = [1, 1]} : vector<2x128xf32> to vector<2x32xf32>
    %175 = vector.extract_strided_slice %172 {offsets = [0, 32], sizes = [2, 32], strides = [1, 1]} : vector<2x128xf32> to vector<2x32xf32>
    %176 = vector.extract_strided_slice %172 {offsets = [0, 96], sizes = [2, 32], strides = [1, 1]} : vector<2x128xf32> to vector<2x32xf32>
    %177 = vector.extract_strided_slice %173 {offsets = [0, 64], sizes = [2, 32], strides = [1, 1]} : vector<2x128xf32> to vector<2x32xf32>
    %178 = arith.mulf %175, %160 : vector<2x32xf32>
    %179 = arith.mulf %174, %177 : vector<2x32xf32>
    %180 = arith.addf %178, %179 : vector<2x32xf32>
    %181 = math.tanh %180 : vector<2x32xf32>
    %182 = arith.mulf %176, %181 : vector<2x32xf32>
    %c0_51 = arith.constant 0 : index
    %c0_52 = arith.constant 0 : index
    %183 = vector.load %arg7[%c0_51, %c0_52] : memref<32x128xf32, #tpu.memory_space<vmem>>, vector<32x128xf32>
    %c0_53 = arith.constant 0 : index
    %c0_54 = arith.constant 0 : index
    %184 = vector.load %arg8[%c0_53, %c0_54] : memref<32x128xf32, #tpu.memory_space<vmem>>, vector<32x128xf32>
    %c0_55 = arith.constant 0 : index
    %c0_56 = arith.constant 0 : index
    %185 = vector.load %arg9[%c0_55, %c0_56] : memref<1x128xf32, #tpu.memory_space<vmem>>, vector<1x128xf32>
    %c0_57 = arith.constant 0 : index
    %c1_58 = arith.constant 1 : index
    %c0_59 = arith.constant 0 : index
    %186 = vector.load %arg2[%c0_57, %c1_58, %c0_59] : memref<2x2x32xf32, #tpu.memory_space<vmem>>, vector<2x1x32xf32>
    %187 = vector.shape_cast %186 : vector<2x1x32xf32> to vector<2x32xf32>
    %c0_60 = arith.constant 0 : index
    %c1_61 = arith.constant 1 : index
    %c0_62 = arith.constant 0 : index
    %188 = vector.load %arg3[%c0_60, %c1_61, %c0_62] : memref<2x2x32xf32, #tpu.memory_space<vmem>>, vector<2x1x32xf32>
    %189 = vector.shape_cast %188 : vector<2x1x32xf32> to vector<2x32xf32>
    %cst_63 = arith.constant dense<0.000000e+00> : vector<2x128xf32>
    %190 = tpu.matmul %42, %183, %cst_63 {dimension_numbers = #tpu.dot_dimension_numbers<[1], [0], [0], [1], [0, 0, 1, 1], [], []>} : vector<2x32xf32>, vector<32x128xf32>, vector<2x128xf32> -> vector<2x128xf32>
    %cst_64 = arith.constant dense<0.000000e+00> : vector<2x128xf32>
    %191 = tpu.matmul %187, %184, %cst_64 {dimension_numbers = #tpu.dot_dimension_numbers<[1], [0], [0], [1], [0, 0, 1, 1], [], []>} : vector<2x32xf32>, vector<32x128xf32>, vector<2x128xf32> -> vector<2x128xf32>
    %192 = arith.addf %190, %191 : vector<2x128xf32>
    %193 = vector.broadcast %185 : vector<1x128xf32> to vector<2x128xf32>
    %194 = arith.addf %192, %193 : vector<2x128xf32>
    %195 = arith.negf %194 : vector<2x128xf32>
    %196 = math.exp %195 : vector<2x128xf32>
    %cst_65 = arith.constant 1.000000e+00 : f32
    %197 = vector.broadcast %cst_65 : f32 to vector<2x128xf32>
    %198 = arith.addf %197, %196 : vector<2x128xf32>
    %199 = arith.divf %197, %198 : vector<2x128xf32>
    %200 = math.tanh %194 : vector<2x128xf32>
    %201 = vector.extract_strided_slice %199 {offsets = [0, 0], sizes = [2, 32], strides = [1, 1]} : vector<2x128xf32> to vector<2x32xf32>
    %202 = vector.extract_strided_slice %199 {offsets = [0, 32], sizes = [2, 32], strides = [1, 1]} : vector<2x128xf32> to vector<2x32xf32>
    %203 = vector.extract_strided_slice %199 {offsets = [0, 96], sizes = [2, 32], strides = [1, 1]} : vector<2x128xf32> to vector<2x32xf32>
    %204 = vector.extract_strided_slice %200 {offsets = [0, 64], sizes = [2, 32], strides = [1, 1]} : vector<2x128xf32> to vector<2x32xf32>
    %205 = arith.mulf %202, %189 : vector<2x32xf32>
    %206 = arith.mulf %201, %204 : vector<2x32xf32>
    %207 = arith.addf %205, %206 : vector<2x32xf32>
    %208 = math.tanh %207 : vector<2x32xf32>
    %209 = arith.mulf %203, %208 : vector<2x32xf32>
    %cst_66 = arith.constant dense<0.000000e+00> : vector<2x128xf32>
    %210 = tpu.matmul %62, %183, %cst_66 {dimension_numbers = #tpu.dot_dimension_numbers<[1], [0], [0], [1], [0, 0, 1, 1], [], []>} : vector<2x32xf32>, vector<32x128xf32>, vector<2x128xf32> -> vector<2x128xf32>
    %cst_67 = arith.constant dense<0.000000e+00> : vector<2x128xf32>
    %211 = tpu.matmul %209, %184, %cst_67 {dimension_numbers = #tpu.dot_dimension_numbers<[1], [0], [0], [1], [0, 0, 1, 1], [], []>} : vector<2x32xf32>, vector<32x128xf32>, vector<2x128xf32> -> vector<2x128xf32>
    %212 = arith.addf %210, %211 : vector<2x128xf32>
    %213 = vector.broadcast %185 : vector<1x128xf32> to vector<2x128xf32>
    %214 = arith.addf %212, %213 : vector<2x128xf32>
    %215 = arith.negf %214 : vector<2x128xf32>
    %216 = math.exp %215 : vector<2x128xf32>
    %cst_68 = arith.constant 1.000000e+00 : f32
    %217 = vector.broadcast %cst_68 : f32 to vector<2x128xf32>
    %218 = arith.addf %217, %216 : vector<2x128xf32>
    %219 = arith.divf %217, %218 : vector<2x128xf32>
    %220 = math.tanh %214 : vector<2x128xf32>
    %221 = vector.extract_strided_slice %219 {offsets = [0, 0], sizes = [2, 32], strides = [1, 1]} : vector<2x128xf32> to vector<2x32xf32>
    %222 = vector.extract_strided_slice %219 {offsets = [0, 32], sizes = [2, 32], strides = [1, 1]} : vector<2x128xf32> to vector<2x32xf32>
    %223 = vector.extract_strided_slice %219 {offsets = [0, 96], sizes = [2, 32], strides = [1, 1]} : vector<2x128xf32> to vector<2x32xf32>
    %224 = vector.extract_strided_slice %220 {offsets = [0, 64], sizes = [2, 32], strides = [1, 1]} : vector<2x128xf32> to vector<2x32xf32>
    %225 = arith.mulf %222, %207 : vector<2x32xf32>
    %226 = arith.mulf %221, %224 : vector<2x32xf32>
    %227 = arith.addf %225, %226 : vector<2x32xf32>
    %228 = math.tanh %227 : vector<2x32xf32>
    %229 = arith.mulf %223, %228 : vector<2x32xf32>
    %cst_69 = arith.constant dense<0.000000e+00> : vector<2x128xf32>
    %230 = tpu.matmul %82, %183, %cst_69 {dimension_numbers = #tpu.dot_dimension_numbers<[1], [0], [0], [1], [0, 0, 1, 1], [], []>} : vector<2x32xf32>, vector<32x128xf32>, vector<2x128xf32> -> vector<2x128xf32>
    %cst_70 = arith.constant dense<0.000000e+00> : vector<2x128xf32>
    %231 = tpu.matmul %229, %184, %cst_70 {dimension_numbers = #tpu.dot_dimension_numbers<[1], [0], [0], [1], [0, 0, 1, 1], [], []>} : vector<2x32xf32>, vector<32x128xf32>, vector<2x128xf32> -> vector<2x128xf32>
    %232 = arith.addf %230, %231 : vector<2x128xf32>
    %233 = vector.broadcast %185 : vector<1x128xf32> to vector<2x128xf32>
    %234 = arith.addf %232, %233 : vector<2x128xf32>
    %235 = arith.negf %234 : vector<2x128xf32>
    %236 = math.exp %235 : vector<2x128xf32>
    %cst_71 = arith.constant 1.000000e+00 : f32
    %237 = vector.broadcast %cst_71 : f32 to vector<2x128xf32>
    %238 = arith.addf %237, %236 : vector<2x128xf32>
    %239 = arith.divf %237, %238 : vector<2x128xf32>
    %240 = math.tanh %234 : vector<2x128xf32>
    %241 = vector.extract_strided_slice %239 {offsets = [0, 0], sizes = [2, 32], strides = [1, 1]} : vector<2x128xf32> to vector<2x32xf32>
    %242 = vector.extract_strided_slice %239 {offsets = [0, 32], sizes = [2, 32], strides = [1, 1]} : vector<2x128xf32> to vector<2x32xf32>
    %243 = vector.extract_strided_slice %239 {offsets = [0, 96], sizes = [2, 32], strides = [1, 1]} : vector<2x128xf32> to vector<2x32xf32>
    %244 = vector.extract_strided_slice %240 {offsets = [0, 64], sizes = [2, 32], strides = [1, 1]} : vector<2x128xf32> to vector<2x32xf32>
    %245 = arith.mulf %242, %227 : vector<2x32xf32>
    %246 = arith.mulf %241, %244 : vector<2x32xf32>
    %247 = arith.addf %245, %246 : vector<2x32xf32>
    %248 = math.tanh %247 : vector<2x32xf32>
    %249 = arith.mulf %243, %248 : vector<2x32xf32>
    %cst_72 = arith.constant dense<0.000000e+00> : vector<2x128xf32>
    %250 = tpu.matmul %102, %183, %cst_72 {dimension_numbers = #tpu.dot_dimension_numbers<[1], [0], [0], [1], [0, 0, 1, 1], [], []>} : vector<2x32xf32>, vector<32x128xf32>, vector<2x128xf32> -> vector<2x128xf32>
    %cst_73 = arith.constant dense<0.000000e+00> : vector<2x128xf32>
    %251 = tpu.matmul %249, %184, %cst_73 {dimension_numbers = #tpu.dot_dimension_numbers<[1], [0], [0], [1], [0, 0, 1, 1], [], []>} : vector<2x32xf32>, vector<32x128xf32>, vector<2x128xf32> -> vector<2x128xf32>
    %252 = arith.addf %250, %251 : vector<2x128xf32>
    %253 = vector.broadcast %185 : vector<1x128xf32> to vector<2x128xf32>
    %254 = arith.addf %252, %253 : vector<2x128xf32>
    %255 = arith.negf %254 : vector<2x128xf32>
    %256 = math.exp %255 : vector<2x128xf32>
    %cst_74 = arith.constant 1.000000e+00 : f32
    %257 = vector.broadcast %cst_74 : f32 to vector<2x128xf32>
    %258 = arith.addf %257, %256 : vector<2x128xf32>
    %259 = arith.divf %257, %258 : vector<2x128xf32>
    %260 = math.tanh %254 : vector<2x128xf32>
    %261 = vector.extract_strided_slice %259 {offsets = [0, 0], sizes = [2, 32], strides = [1, 1]} : vector<2x128xf32> to vector<2x32xf32>
    %262 = vector.extract_strided_slice %259 {offsets = [0, 32], sizes = [2, 32], strides = [1, 1]} : vector<2x128xf32> to vector<2x32xf32>
    %263 = vector.extract_strided_slice %259 {offsets = [0, 96], sizes = [2, 32], strides = [1, 1]} : vector<2x128xf32> to vector<2x32xf32>
    %264 = vector.extract_strided_slice %260 {offsets = [0, 64], sizes = [2, 32], strides = [1, 1]} : vector<2x128xf32> to vector<2x32xf32>
    %265 = arith.mulf %262, %247 : vector<2x32xf32>
    %266 = arith.mulf %261, %264 : vector<2x32xf32>
    %267 = arith.addf %265, %266 : vector<2x32xf32>
    %268 = math.tanh %267 : vector<2x32xf32>
    %269 = arith.mulf %263, %268 : vector<2x32xf32>
    %cst_75 = arith.constant dense<0.000000e+00> : vector<2x128xf32>
    %270 = tpu.matmul %122, %183, %cst_75 {dimension_numbers = #tpu.dot_dimension_numbers<[1], [0], [0], [1], [0, 0, 1, 1], [], []>} : vector<2x32xf32>, vector<32x128xf32>, vector<2x128xf32> -> vector<2x128xf32>
    %cst_76 = arith.constant dense<0.000000e+00> : vector<2x128xf32>
    %271 = tpu.matmul %269, %184, %cst_76 {dimension_numbers = #tpu.dot_dimension_numbers<[1], [0], [0], [1], [0, 0, 1, 1], [], []>} : vector<2x32xf32>, vector<32x128xf32>, vector<2x128xf32> -> vector<2x128xf32>
    %272 = arith.addf %270, %271 : vector<2x128xf32>
    %273 = vector.broadcast %185 : vector<1x128xf32> to vector<2x128xf32>
    %274 = arith.addf %272, %273 : vector<2x128xf32>
    %275 = arith.negf %274 : vector<2x128xf32>
    %276 = math.exp %275 : vector<2x128xf32>
    %cst_77 = arith.constant 1.000000e+00 : f32
    %277 = vector.broadcast %cst_77 : f32 to vector<2x128xf32>
    %278 = arith.addf %277, %276 : vector<2x128xf32>
    %279 = arith.divf %277, %278 : vector<2x128xf32>
    %280 = math.tanh %274 : vector<2x128xf32>
    %281 = vector.extract_strided_slice %279 {offsets = [0, 0], sizes = [2, 32], strides = [1, 1]} : vector<2x128xf32> to vector<2x32xf32>
    %282 = vector.extract_strided_slice %279 {offsets = [0, 32], sizes = [2, 32], strides = [1, 1]} : vector<2x128xf32> to vector<2x32xf32>
    %283 = vector.extract_strided_slice %279 {offsets = [0, 96], sizes = [2, 32], strides = [1, 1]} : vector<2x128xf32> to vector<2x32xf32>
    %284 = vector.extract_strided_slice %280 {offsets = [0, 64], sizes = [2, 32], strides = [1, 1]} : vector<2x128xf32> to vector<2x32xf32>
    %285 = arith.mulf %282, %267 : vector<2x32xf32>
    %286 = arith.mulf %281, %284 : vector<2x32xf32>
    %287 = arith.addf %285, %286 : vector<2x32xf32>
    %288 = math.tanh %287 : vector<2x32xf32>
    %289 = arith.mulf %283, %288 : vector<2x32xf32>
    %cst_78 = arith.constant dense<0.000000e+00> : vector<2x128xf32>
    %290 = tpu.matmul %142, %183, %cst_78 {dimension_numbers = #tpu.dot_dimension_numbers<[1], [0], [0], [1], [0, 0, 1, 1], [], []>} : vector<2x32xf32>, vector<32x128xf32>, vector<2x128xf32> -> vector<2x128xf32>
    %cst_79 = arith.constant dense<0.000000e+00> : vector<2x128xf32>
    %291 = tpu.matmul %289, %184, %cst_79 {dimension_numbers = #tpu.dot_dimension_numbers<[1], [0], [0], [1], [0, 0, 1, 1], [], []>} : vector<2x32xf32>, vector<32x128xf32>, vector<2x128xf32> -> vector<2x128xf32>
    %292 = arith.addf %290, %291 : vector<2x128xf32>
    %293 = vector.broadcast %185 : vector<1x128xf32> to vector<2x128xf32>
    %294 = arith.addf %292, %293 : vector<2x128xf32>
    %295 = arith.negf %294 : vector<2x128xf32>
    %296 = math.exp %295 : vector<2x128xf32>
    %cst_80 = arith.constant 1.000000e+00 : f32
    %297 = vector.broadcast %cst_80 : f32 to vector<2x128xf32>
    %298 = arith.addf %297, %296 : vector<2x128xf32>
    %299 = arith.divf %297, %298 : vector<2x128xf32>
    %300 = math.tanh %294 : vector<2x128xf32>
    %301 = vector.extract_strided_slice %299 {offsets = [0, 0], sizes = [2, 32], strides = [1, 1]} : vector<2x128xf32> to vector<2x32xf32>
    %302 = vector.extract_strided_slice %299 {offsets = [0, 32], sizes = [2, 32], strides = [1, 1]} : vector<2x128xf32> to vector<2x32xf32>
    %303 = vector.extract_strided_slice %299 {offsets = [0, 96], sizes = [2, 32], strides = [1, 1]} : vector<2x128xf32> to vector<2x32xf32>
    %304 = vector.extract_strided_slice %300 {offsets = [0, 64], sizes = [2, 32], strides = [1, 1]} : vector<2x128xf32> to vector<2x32xf32>
    %305 = arith.mulf %302, %287 : vector<2x32xf32>
    %306 = arith.mulf %301, %304 : vector<2x32xf32>
    %307 = arith.addf %305, %306 : vector<2x32xf32>
    %308 = math.tanh %307 : vector<2x32xf32>
    %309 = arith.mulf %303, %308 : vector<2x32xf32>
    %cst_81 = arith.constant dense<0.000000e+00> : vector<2x128xf32>
    %310 = tpu.matmul %162, %183, %cst_81 {dimension_numbers = #tpu.dot_dimension_numbers<[1], [0], [0], [1], [0, 0, 1, 1], [], []>} : vector<2x32xf32>, vector<32x128xf32>, vector<2x128xf32> -> vector<2x128xf32>
    %cst_82 = arith.constant dense<0.000000e+00> : vector<2x128xf32>
    %311 = tpu.matmul %309, %184, %cst_82 {dimension_numbers = #tpu.dot_dimension_numbers<[1], [0], [0], [1], [0, 0, 1, 1], [], []>} : vector<2x32xf32>, vector<32x128xf32>, vector<2x128xf32> -> vector<2x128xf32>
    %312 = arith.addf %310, %311 : vector<2x128xf32>
    %313 = vector.broadcast %185 : vector<1x128xf32> to vector<2x128xf32>
    %314 = arith.addf %312, %313 : vector<2x128xf32>
    %315 = arith.negf %314 : vector<2x128xf32>
    %316 = math.exp %315 : vector<2x128xf32>
    %cst_83 = arith.constant 1.000000e+00 : f32
    %317 = vector.broadcast %cst_83 : f32 to vector<2x128xf32>
    %318 = arith.addf %317, %316 : vector<2x128xf32>
    %319 = arith.divf %317, %318 : vector<2x128xf32>
    %320 = math.tanh %314 : vector<2x128xf32>
    %321 = vector.extract_strided_slice %319 {offsets = [0, 0], sizes = [2, 32], strides = [1, 1]} : vector<2x128xf32> to vector<2x32xf32>
    %322 = vector.extract_strided_slice %319 {offsets = [0, 32], sizes = [2, 32], strides = [1, 1]} : vector<2x128xf32> to vector<2x32xf32>
    %323 = vector.extract_strided_slice %319 {offsets = [0, 96], sizes = [2, 32], strides = [1, 1]} : vector<2x128xf32> to vector<2x32xf32>
    %324 = vector.extract_strided_slice %320 {offsets = [0, 64], sizes = [2, 32], strides = [1, 1]} : vector<2x128xf32> to vector<2x32xf32>
    %325 = arith.mulf %322, %307 : vector<2x32xf32>
    %326 = arith.mulf %321, %324 : vector<2x32xf32>
    %327 = arith.addf %325, %326 : vector<2x32xf32>
    %328 = math.tanh %327 : vector<2x32xf32>
    %329 = arith.mulf %323, %328 : vector<2x32xf32>
    %cst_84 = arith.constant dense<0.000000e+00> : vector<2x128xf32>
    %330 = tpu.matmul %182, %183, %cst_84 {dimension_numbers = #tpu.dot_dimension_numbers<[1], [0], [0], [1], [0, 0, 1, 1], [], []>} : vector<2x32xf32>, vector<32x128xf32>, vector<2x128xf32> -> vector<2x128xf32>
    %cst_85 = arith.constant dense<0.000000e+00> : vector<2x128xf32>
    %331 = tpu.matmul %329, %184, %cst_85 {dimension_numbers = #tpu.dot_dimension_numbers<[1], [0], [0], [1], [0, 0, 1, 1], [], []>} : vector<2x32xf32>, vector<32x128xf32>, vector<2x128xf32> -> vector<2x128xf32>
    %332 = arith.addf %330, %331 : vector<2x128xf32>
    %333 = vector.broadcast %185 : vector<1x128xf32> to vector<2x128xf32>
    %334 = arith.addf %332, %333 : vector<2x128xf32>
    %335 = arith.negf %334 : vector<2x128xf32>
    %336 = math.exp %335 : vector<2x128xf32>
    %cst_86 = arith.constant 1.000000e+00 : f32
    %337 = vector.broadcast %cst_86 : f32 to vector<2x128xf32>
    %338 = arith.addf %337, %336 : vector<2x128xf32>
    %339 = arith.divf %337, %338 : vector<2x128xf32>
    %340 = math.tanh %334 : vector<2x128xf32>
    %341 = vector.extract_strided_slice %339 {offsets = [0, 0], sizes = [2, 32], strides = [1, 1]} : vector<2x128xf32> to vector<2x32xf32>
    %342 = vector.extract_strided_slice %339 {offsets = [0, 32], sizes = [2, 32], strides = [1, 1]} : vector<2x128xf32> to vector<2x32xf32>
    %343 = vector.extract_strided_slice %339 {offsets = [0, 96], sizes = [2, 32], strides = [1, 1]} : vector<2x128xf32> to vector<2x32xf32>
    %344 = vector.extract_strided_slice %340 {offsets = [0, 64], sizes = [2, 32], strides = [1, 1]} : vector<2x128xf32> to vector<2x32xf32>
    %345 = arith.mulf %342, %327 : vector<2x32xf32>
    %346 = arith.mulf %341, %344 : vector<2x32xf32>
    %347 = arith.addf %345, %346 : vector<2x32xf32>
    %348 = math.tanh %347 : vector<2x32xf32>
    %349 = arith.mulf %343, %348 : vector<2x32xf32>
    %c0_87 = arith.constant 0 : index
    %c0_88 = arith.constant 0 : index
    %350 = vector.load %arg10[%c0_87, %c0_88] : memref<32x128xf32, #tpu.memory_space<vmem>>, vector<32x128xf32>
    %c0_89 = arith.constant 0 : index
    %c0_90 = arith.constant 0 : index
    %351 = vector.load %arg11[%c0_89, %c0_90] : memref<1x128xf32, #tpu.memory_space<vmem>>, vector<1x128xf32>
    %cst_91 = arith.constant dense<0.000000e+00> : vector<2x128xf32>
    %352 = tpu.matmul %209, %350, %cst_91 {dimension_numbers = #tpu.dot_dimension_numbers<[1], [0], [0], [1], [0, 0, 1, 1], [], []>} : vector<2x32xf32>, vector<32x128xf32>, vector<2x128xf32> -> vector<2x128xf32>
    %353 = vector.broadcast %351 : vector<1x128xf32> to vector<2x128xf32>
    %354 = arith.addf %352, %353 : vector<2x128xf32>
    %cst_92 = arith.constant dense<0xFF800000> : vector<2xf32>
    %355 = vector.multi_reduction <maximumf>, %354, %cst_92 [1] : vector<2x128xf32> to vector<2xf32>
    %356 = vector.shape_cast %355 : vector<2xf32> to vector<2x1xf32>
    %357 = vector.broadcast %356 : vector<2x1xf32> to vector<2x128xf32>
    %358 = arith.subf %354, %357 : vector<2x128xf32>
    %359 = math.exp %358 : vector<2x128xf32>
    %cst_93 = arith.constant dense<0.000000e+00> : vector<2xf32>
    %360 = vector.multi_reduction <add>, %359, %cst_93 [1] : vector<2x128xf32> to vector<2xf32>
    %361 = vector.shape_cast %360 : vector<2xf32> to vector<2x1xf32>
    %362 = math.log %361 : vector<2x1xf32>
    %363 = vector.broadcast %362 : vector<2x1xf32> to vector<2x128xf32>
    %364 = arith.subf %358, %363 : vector<2x128xf32>
    %c0_94 = arith.constant 0 : index
    %c0_95 = arith.constant 0 : index
    %c0_96 = arith.constant 0 : index
    %365 = vector.load %arg12[%c0_94, %c0_95, %c0_96] : memref<2x8x128xf32, #tpu.memory_space<vmem>>, vector<2x1x128xf32>
    %366 = vector.shape_cast %365 : vector<2x1x128xf32> to vector<2x128xf32>
    %367 = vector.shape_cast %364 : vector<2x128xf32> to vector<2x1x128xf32>
    tpu.vector_store %arg12[%c0_94, %c0_95, %c0_96], %367 {strides = array<i32>} : memref<2x8x128xf32, #tpu.memory_space<vmem>>, vector<2x1x128xf32>,
    %cst_97 = arith.constant dense<0.000000e+00> : vector<2x128xf32>
    %368 = tpu.matmul %229, %350, %cst_97 {dimension_numbers = #tpu.dot_dimension_numbers<[1], [0], [0], [1], [0, 0, 1, 1], [], []>} : vector<2x32xf32>, vector<32x128xf32>, vector<2x128xf32> -> vector<2x128xf32>
    %369 = vector.broadcast %351 : vector<1x128xf32> to vector<2x128xf32>
    %370 = arith.addf %368, %369 : vector<2x128xf32>
    %cst_98 = arith.constant dense<0xFF800000> : vector<2xf32>
    %371 = vector.multi_reduction <maximumf>, %370, %cst_98 [1] : vector<2x128xf32> to vector<2xf32>
    %372 = vector.shape_cast %371 : vector<2xf32> to vector<2x1xf32>
    %373 = vector.broadcast %372 : vector<2x1xf32> to vector<2x128xf32>
    %374 = arith.subf %370, %373 : vector<2x128xf32>
    %375 = math.exp %374 : vector<2x128xf32>
    %cst_99 = arith.constant dense<0.000000e+00> : vector<2xf32>
    %376 = vector.multi_reduction <add>, %375, %cst_99 [1] : vector<2x128xf32> to vector<2xf32>
    %377 = vector.shape_cast %376 : vector<2xf32> to vector<2x1xf32>
    %378 = math.log %377 : vector<2x1xf32>
    %379 = vector.broadcast %378 : vector<2x1xf32> to vector<2x128xf32>
    %380 = arith.subf %374, %379 : vector<2x128xf32>
    %c0_100 = arith.constant 0 : index
    %c1_101 = arith.constant 1 : index
    %c0_102 = arith.constant 0 : index
    %381 = vector.load %arg12[%c0_100, %c1_101, %c0_102] : memref<2x8x128xf32, #tpu.memory_space<vmem>>, vector<2x1x128xf32>
    %382 = vector.shape_cast %381 : vector<2x1x128xf32> to vector<2x128xf32>
    %383 = vector.shape_cast %380 : vector<2x128xf32> to vector<2x1x128xf32>
    tpu.vector_store %arg12[%c0_100, %c1_101, %c0_102], %383 {strides = array<i32>} : memref<2x8x128xf32, #tpu.memory_space<vmem>>, vector<2x1x128xf32>,
    %cst_103 = arith.constant dense<0.000000e+00> : vector<2x128xf32>
    %384 = tpu.matmul %249, %350, %cst_103 {dimension_numbers = #tpu.dot_dimension_numbers<[1], [0], [0], [1], [0, 0, 1, 1], [], []>} : vector<2x32xf32>, vector<32x128xf32>, vector<2x128xf32> -> vector<2x128xf32>
    %385 = vector.broadcast %351 : vector<1x128xf32> to vector<2x128xf32>
    %386 = arith.addf %384, %385 : vector<2x128xf32>
    %cst_104 = arith.constant dense<0xFF800000> : vector<2xf32>
    %387 = vector.multi_reduction <maximumf>, %386, %cst_104 [1] : vector<2x128xf32> to vector<2xf32>
    %388 = vector.shape_cast %387 : vector<2xf32> to vector<2x1xf32>
    %389 = vector.broadcast %388 : vector<2x1xf32> to vector<2x128xf32>
    %390 = arith.subf %386, %389 : vector<2x128xf32>
    %391 = math.exp %390 : vector<2x128xf32>
    %cst_105 = arith.constant dense<0.000000e+00> : vector<2xf32>
    %392 = vector.multi_reduction <add>, %391, %cst_105 [1] : vector<2x128xf32> to vector<2xf32>
    %393 = vector.shape_cast %392 : vector<2xf32> to vector<2x1xf32>
    %394 = math.log %393 : vector<2x1xf32>
    %395 = vector.broadcast %394 : vector<2x1xf32> to vector<2x128xf32>
    %396 = arith.subf %390, %395 : vector<2x128xf32>
    %c0_106 = arith.constant 0 : index
    %c2_107 = arith.constant 2 : index
    %c0_108 = arith.constant 0 : index
    %397 = vector.load %arg12[%c0_106, %c2_107, %c0_108] : memref<2x8x128xf32, #tpu.memory_space<vmem>>, vector<2x1x128xf32>
    %398 = vector.shape_cast %397 : vector<2x1x128xf32> to vector<2x128xf32>
    %399 = vector.shape_cast %396 : vector<2x128xf32> to vector<2x1x128xf32>
    tpu.vector_store %arg12[%c0_106, %c2_107, %c0_108], %399 {strides = array<i32>} : memref<2x8x128xf32, #tpu.memory_space<vmem>>, vector<2x1x128xf32>,
    %cst_109 = arith.constant dense<0.000000e+00> : vector<2x128xf32>
    %400 = tpu.matmul %269, %350, %cst_109 {dimension_numbers = #tpu.dot_dimension_numbers<[1], [0], [0], [1], [0, 0, 1, 1], [], []>} : vector<2x32xf32>, vector<32x128xf32>, vector<2x128xf32> -> vector<2x128xf32>
    %401 = vector.broadcast %351 : vector<1x128xf32> to vector<2x128xf32>
    %402 = arith.addf %400, %401 : vector<2x128xf32>
    %cst_110 = arith.constant dense<0xFF800000> : vector<2xf32>
    %403 = vector.multi_reduction <maximumf>, %402, %cst_110 [1] : vector<2x128xf32> to vector<2xf32>
    %404 = vector.shape_cast %403 : vector<2xf32> to vector<2x1xf32>
    %405 = vector.broadcast %404 : vector<2x1xf32> to vector<2x128xf32>
    %406 = arith.subf %402, %405 : vector<2x128xf32>
    %407 = math.exp %406 : vector<2x128xf32>
    %cst_111 = arith.constant dense<0.000000e+00> : vector<2xf32>
    %408 = vector.multi_reduction <add>, %407, %cst_111 [1] : vector<2x128xf32> to vector<2xf32>
    %409 = vector.shape_cast %408 : vector<2xf32> to vector<2x1xf32>
    %410 = math.log %409 : vector<2x1xf32>
    %411 = vector.broadcast %410 : vector<2x1xf32> to vector<2x128xf32>
    %412 = arith.subf %406, %411 : vector<2x128xf32>
    %c0_112 = arith.constant 0 : index
    %c3_113 = arith.constant 3 : index
    %c0_114 = arith.constant 0 : index
    %413 = vector.load %arg12[%c0_112, %c3_113, %c0_114] : memref<2x8x128xf32, #tpu.memory_space<vmem>>, vector<2x1x128xf32>
    %414 = vector.shape_cast %413 : vector<2x1x128xf32> to vector<2x128xf32>
    %415 = vector.shape_cast %412 : vector<2x128xf32> to vector<2x1x128xf32>
    tpu.vector_store %arg12[%c0_112, %c3_113, %c0_114], %415 {strides = array<i32>} : memref<2x8x128xf32, #tpu.memory_space<vmem>>, vector<2x1x128xf32>,
    %cst_115 = arith.constant dense<0.000000e+00> : vector<2x128xf32>
    %416 = tpu.matmul %289, %350, %cst_115 {dimension_numbers = #tpu.dot_dimension_numbers<[1], [0], [0], [1], [0, 0, 1, 1], [], []>} : vector<2x32xf32>, vector<32x128xf32>, vector<2x128xf32> -> vector<2x128xf32>
    %417 = vector.broadcast %351 : vector<1x128xf32> to vector<2x128xf32>
    %418 = arith.addf %416, %417 : vector<2x128xf32>
    %cst_116 = arith.constant dense<0xFF800000> : vector<2xf32>
    %419 = vector.multi_reduction <maximumf>, %418, %cst_116 [1] : vector<2x128xf32> to vector<2xf32>
    %420 = vector.shape_cast %419 : vector<2xf32> to vector<2x1xf32>
    %421 = vector.broadcast %420 : vector<2x1xf32> to vector<2x128xf32>
    %422 = arith.subf %418, %421 : vector<2x128xf32>
    %423 = math.exp %422 : vector<2x128xf32>
    %cst_117 = arith.constant dense<0.000000e+00> : vector<2xf32>
    %424 = vector.multi_reduction <add>, %423, %cst_117 [1] : vector<2x128xf32> to vector<2xf32>
    %425 = vector.shape_cast %424 : vector<2xf32> to vector<2x1xf32>
    %426 = math.log %425 : vector<2x1xf32>
    %427 = vector.broadcast %426 : vector<2x1xf32> to vector<2x128xf32>
    %428 = arith.subf %422, %427 : vector<2x128xf32>
    %c0_118 = arith.constant 0 : index
    %c4_119 = arith.constant 4 : index
    %c0_120 = arith.constant 0 : index
    %429 = vector.load %arg12[%c0_118, %c4_119, %c0_120] : memref<2x8x128xf32, #tpu.memory_space<vmem>>, vector<2x1x128xf32>
    %430 = vector.shape_cast %429 : vector<2x1x128xf32> to vector<2x128xf32>
    %431 = vector.shape_cast %428 : vector<2x128xf32> to vector<2x1x128xf32>
    tpu.vector_store %arg12[%c0_118, %c4_119, %c0_120], %431 {strides = array<i32>} : memref<2x8x128xf32, #tpu.memory_space<vmem>>, vector<2x1x128xf32>,
    %cst_121 = arith.constant dense<0.000000e+00> : vector<2x128xf32>
    %432 = tpu.matmul %309, %350, %cst_121 {dimension_numbers = #tpu.dot_dimension_numbers<[1], [0], [0], [1], [0, 0, 1, 1], [], []>} : vector<2x32xf32>, vector<32x128xf32>, vector<2x128xf32> -> vector<2x128xf32>
    %433 = vector.broadcast %351 : vector<1x128xf32> to vector<2x128xf32>
    %434 = arith.addf %432, %433 : vector<2x128xf32>
    %cst_122 = arith.constant dense<0xFF800000> : vector<2xf32>
    %435 = vector.multi_reduction <maximumf>, %434, %cst_122 [1] : vector<2x128xf32> to vector<2xf32>
    %436 = vector.shape_cast %435 : vector<2xf32> to vector<2x1xf32>
    %437 = vector.broadcast %436 : vector<2x1xf32> to vector<2x128xf32>
    %438 = arith.subf %434, %437 : vector<2x128xf32>
    %439 = math.exp %438 : vector<2x128xf32>
    %cst_123 = arith.constant dense<0.000000e+00> : vector<2xf32>
    %440 = vector.multi_reduction <add>, %439, %cst_123 [1] : vector<2x128xf32> to vector<2xf32>
    %441 = vector.shape_cast %440 : vector<2xf32> to vector<2x1xf32>
    %442 = math.log %441 : vector<2x1xf32>
    %443 = vector.broadcast %442 : vector<2x1xf32> to vector<2x128xf32>
    %444 = arith.subf %438, %443 : vector<2x128xf32>
    %c0_124 = arith.constant 0 : index
    %c5_125 = arith.constant 5 : index
    %c0_126 = arith.constant 0 : index
    %445 = vector.load %arg12[%c0_124, %c5_125, %c0_126] : memref<2x8x128xf32, #tpu.memory_space<vmem>>, vector<2x1x128xf32>
    %446 = vector.shape_cast %445 : vector<2x1x128xf32> to vector<2x128xf32>
    %447 = vector.shape_cast %444 : vector<2x128xf32> to vector<2x1x128xf32>
    tpu.vector_store %arg12[%c0_124, %c5_125, %c0_126], %447 {strides = array<i32>} : memref<2x8x128xf32, #tpu.memory_space<vmem>>, vector<2x1x128xf32>,
    %cst_127 = arith.constant dense<0.000000e+00> : vector<2x128xf32>
    %448 = tpu.matmul %329, %350, %cst_127 {dimension_numbers = #tpu.dot_dimension_numbers<[1], [0], [0], [1], [0, 0, 1, 1], [], []>} : vector<2x32xf32>, vector<32x128xf32>, vector<2x128xf32> -> vector<2x128xf32>
    %449 = vector.broadcast %351 : vector<1x128xf32> to vector<2x128xf32>
    %450 = arith.addf %448, %449 : vector<2x128xf32>
    %cst_128 = arith.constant dense<0xFF800000> : vector<2xf32>
    %451 = vector.multi_reduction <maximumf>, %450, %cst_128 [1] : vector<2x128xf32> to vector<2xf32>
    %452 = vector.shape_cast %451 : vector<2xf32> to vector<2x1xf32>
    %453 = vector.broadcast %452 : vector<2x1xf32> to vector<2x128xf32>
    %454 = arith.subf %450, %453 : vector<2x128xf32>
    %455 = math.exp %454 : vector<2x128xf32>
    %cst_129 = arith.constant dense<0.000000e+00> : vector<2xf32>
    %456 = vector.multi_reduction <add>, %455, %cst_129 [1] : vector<2x128xf32> to vector<2xf32>
    %457 = vector.shape_cast %456 : vector<2xf32> to vector<2x1xf32>
    %458 = math.log %457 : vector<2x1xf32>
    %459 = vector.broadcast %458 : vector<2x1xf32> to vector<2x128xf32>
    %460 = arith.subf %454, %459 : vector<2x128xf32>
    %c0_130 = arith.constant 0 : index
    %c6_131 = arith.constant 6 : index
    %c0_132 = arith.constant 0 : index
    %461 = vector.load %arg12[%c0_130, %c6_131, %c0_132] : memref<2x8x128xf32, #tpu.memory_space<vmem>>, vector<2x1x128xf32>
    %462 = vector.shape_cast %461 : vector<2x1x128xf32> to vector<2x128xf32>
    %463 = vector.shape_cast %460 : vector<2x128xf32> to vector<2x1x128xf32>
    tpu.vector_store %arg12[%c0_130, %c6_131, %c0_132], %463 {strides = array<i32>} : memref<2x8x128xf32, #tpu.memory_space<vmem>>, vector<2x1x128xf32>,
    %cst_133 = arith.constant dense<0.000000e+00> : vector<2x128xf32>
    %464 = tpu.matmul %349, %350, %cst_133 {dimension_numbers = #tpu.dot_dimension_numbers<[1], [0], [0], [1], [0, 0, 1, 1], [], []>} : vector<2x32xf32>, vector<32x128xf32>, vector<2x128xf32> -> vector<2x128xf32>
    %465 = vector.broadcast %351 : vector<1x128xf32> to vector<2x128xf32>
    %466 = arith.addf %464, %465 : vector<2x128xf32>
    %cst_134 = arith.constant dense<0xFF800000> : vector<2xf32>
    %467 = vector.multi_reduction <maximumf>, %466, %cst_134 [1] : vector<2x128xf32> to vector<2xf32>
    %468 = vector.shape_cast %467 : vector<2xf32> to vector<2x1xf32>
    %469 = vector.broadcast %468 : vector<2x1xf32> to vector<2x128xf32>
    %470 = arith.subf %466, %469 : vector<2x128xf32>
    %471 = math.exp %470 : vector<2x128xf32>
    %cst_135 = arith.constant dense<0.000000e+00> : vector<2xf32>
    %472 = vector.multi_reduction <add>, %471, %cst_135 [1] : vector<2x128xf32> to vector<2xf32>
    %473 = vector.shape_cast %472 : vector<2xf32> to vector<2x1xf32>
    %474 = math.log %473 : vector<2x1xf32>
    %475 = vector.broadcast %474 : vector<2x1xf32> to vector<2x128xf32>
    %476 = arith.subf %470, %475 : vector<2x128xf32>
    %c0_136 = arith.constant 0 : index
    %c7_137 = arith.constant 7 : index
    %c0_138 = arith.constant 0 : index
    %477 = vector.load %arg12[%c0_136, %c7_137, %c0_138] : memref<2x8x128xf32, #tpu.memory_space<vmem>>, vector<2x1x128xf32>
    %478 = vector.shape_cast %477 : vector<2x1x128xf32> to vector<2x128xf32>
    %479 = vector.shape_cast %476 : vector<2x128xf32> to vector<2x1x128xf32>
    tpu.vector_store %arg12[%c0_136, %c7_137, %c0_138], %479 {strides = array<i32>} : memref<2x8x128xf32, #tpu.memory_space<vmem>>, vector<2x1x128xf32>,
    return
  }
  func.func @transform_0(%arg0: i32) -> (i32, i32, i32) {
    %c0_i32 = arith.constant 0 : i32
    %c0_i32_0 = arith.constant 0 : i32
    %c0_i32_1 = arith.constant 0 : i32
    return %arg0, %c0_i32, %c0_i32_0 : i32, i32, i32
  }
  func.func @transform_1(%arg0: i32) -> (i32, i32, i32) {
    %c0_i32 = arith.constant 0 : i32
    %c0_i32_0 = arith.constant 0 : i32
    %c0_i32_1 = arith.constant 0 : i32
    return %arg0, %c0_i32, %c0_i32_0 : i32, i32, i32
  }
  func.func @transform_2(%arg0: i32) -> (i32, i32, i32) {
    %c0_i32 = arith.constant 0 : i32
    %c0_i32_0 = arith.constant 0 : i32
    %c0_i32_1 = arith.constant 0 : i32
    return %arg0, %c0_i32, %c0_i32_0 : i32, i32, i32
  }
  func.func @transform_3(%arg0: i32) -> (i32, i32) {
    %c0_i32 = arith.constant 0 : i32
    %c0_i32_0 = arith.constant 0 : i32
    %c0_i32_1 = arith.constant 0 : i32
    return %c0_i32, %c0_i32_0 : i32, i32
  }
  func.func @transform_4(%arg0: i32) -> (i32, i32) {
    %c0_i32 = arith.constant 0 : i32
    %c0_i32_0 = arith.constant 0 : i32
    %c0_i32_1 = arith.constant 0 : i32
    return %c0_i32, %c0_i32_0 : i32, i32
  }
  func.func @transform_5(%arg0: i32) -> (i32, i32) {
    %c0_i32 = arith.constant 0 : i32
    %c0_i32_0 = arith.constant 0 : i32
    %c0_i32_1 = arith.constant 0 : i32
    return %c0_i32, %c0_i32_0 : i32, i32
  }
  func.func @transform_6(%arg0: i32) -> (i32, i32) {
    %c0_i32 = arith.constant 0 : i32
    %c0_i32_0 = arith.constant 0 : i32
    %c0_i32_1 = arith.constant 0 : i32
    return %c0_i32, %c0_i32_0 : i32, i32
  }
  func.func @transform_7(%arg0: i32) -> (i32, i32) {
    %c0_i32 = arith.constant 0 : i32
    %c0_i32_0 = arith.constant 0 : i32
    %c0_i32_1 = arith.constant 0 : i32
    return %c0_i32, %c0_i32_0 : i32, i32
  }
  func.func @transform_8(%arg0: i32) -> (i32, i32) {
    %c0_i32 = arith.constant 0 : i32
    %c0_i32_0 = arith.constant 0 : i32
    %c0_i32_1 = arith.constant 0 : i32
    return %c0_i32, %c0_i32_0 : i32, i32
  }
  func.func @transform_9(%arg0: i32) -> (i32, i32) {
    %c0_i32 = arith.constant 0 : i32
    %c0_i32_0 = arith.constant 0 : i32
    %c0_i32_1 = arith.constant 0 : i32
    return %c0_i32, %c0_i32_0 : i32, i32
  }
  func.func @transform_10(%arg0: i32) -> (i32, i32) {
    %c0_i32 = arith.constant 0 : i32
    %c0_i32_0 = arith.constant 0 : i32
    %c0_i32_1 = arith.constant 0 : i32
    return %c0_i32, %c0_i32_0 : i32, i32
  }
  func.func @transform_11(%arg0: i32) -> (i32, i32, i32) {
    %c0_i32 = arith.constant 0 : i32
    %c0_i32_0 = arith.constant 0 : i32
    %c0_i32_1 = arith.constant 0 : i32
    return %arg0, %c0_i32, %c0_i32_0 : i32, i32, i32
  }
}

</mosaic_0001>

<llo_original>
// kernel: seq_model_forward.1
$region0: #{seq_model_forward.1}
  #allocation0 [shape = 'u32[]', space=smem, size = 0x4, offset = 0x4, fixed_abs, tag = 'smem constant byte address 0x4 - core index']
  #allocation1 [shape = 'u32[72,128]{1,0:T(1,128)}', space=vmem, size = 0x9000, scoped, tag = 'internal scratch']
  %s0 = inlined_call_operand.vmem [shape: f32[2,8,16], index: 0, kind: input, shape index: {}]
  %s1 = inlined_call_operand.vmem [shape: f32[2,2,32], index: 1, kind: input, shape index: {}]
  %s2 = inlined_call_operand.vmem [shape: f32[2,2,32], index: 2, kind: input, shape index: {}]
  %s3 = inlined_call_operand.vmem [shape: f32[16,128], index: 3, kind: input, shape index: {}]
  %s4 = inlined_call_operand.vmem [shape: f32[32,128], index: 4, kind: input, shape index: {}]
  %s5 = inlined_call_operand.vmem [shape: f32[1,128], index: 5, kind: input, shape index: {}]
  %s6 = inlined_call_operand.vmem [shape: f32[32,128], index: 6, kind: input, shape index: {}]
  %s7 = inlined_call_operand.vmem [shape: f32[32,128], index: 7, kind: input, shape index: {}]
  %s8 = inlined_call_operand.vmem [shape: f32[1,128], index: 8, kind: input, shape index: {}]
  %s9 = inlined_call_operand.vmem [shape: f32[32,128], index: 9, kind: input, shape index: {}]
  %s10 = inlined_call_operand.vmem [shape: f32[1,128], index: 10, kind: input, shape index: {}]
  %s11 = inlined_call_operand.hbm [shape: f32[2,8,128], index: 11, kind: output, shape index: {}]
  %s12 = sld [smem:[#allocation0]]
  $region54: #{seq_model_forward.1} parent=0
    _
  %s14 = ssub.s32 1, %s12
  %s15 = scalar_select 0, %s14, %s12
  $region1: #{seq_model_forward.1} parent=0
    #allocation2 [shape = 'u8[8192]{0}', space=vmem, size = 0x2000, scoped, tag = 'output window, operand 0, single buffered']
    #allocation3 [shape = 's32[1]{0}', space=sflag, size = 0x4, scoped, tag = 'scoped memory for seq_model_forward.1']
    %16 = vsyncpa [#allocation3], 0
    // Predicated region
    $region2: #{seq_model_forward.1} parent=1 // pred_check
      _
    $region3: #{seq_model_forward.1} parent=1 // pred_check_branch
      %18 = sbr.rel (0) target = $region5
    $region4: #{seq_model_forward.1} parent=1 // pred_region
      _
    $region5: #{seq_model_forward.1} parent=1 // pred_fallthru
      _
    // Predicated region
    $region6: #{seq_model_forward.1} parent=1 // pred_check
      _
    $region7: #{seq_model_forward.1} parent=1 // pred_check_branch
      %20 = sbr.rel (0) target = $region9
    $region8: #{seq_model_forward.1} parent=1 // pred_region
      _
    $region9: #{seq_model_forward.1} parent=1 // pred_fallthru
      _
    // Predicated region
    $region10: #{seq_model_forward.1} parent=1 // pred_check
      _
    $region11: #{seq_model_forward.1} parent=1 // pred_check_branch
      %22 = sbr.rel (0) target = $region13
    $region12: #{seq_model_forward.1} parent=1 // pred_region
      _
    $region13: #{seq_model_forward.1} parent=1 // pred_fallthru
      _
    // Predicated region
    $region14: #{seq_model_forward.1} parent=1 // pred_check
      _
    $region15: #{seq_model_forward.1} parent=1 // pred_check_branch
      %24 = sbr.rel (0) target = $region17
    $region16: #{seq_model_forward.1} parent=1 // pred_region
      _
    $region17: #{seq_model_forward.1} parent=1 // pred_fallthru
      _
    // Predicated region
    $region18: #{seq_model_forward.1} parent=1 // pred_check
      _
    $region19: #{seq_model_forward.1} parent=1 // pred_check_branch
      %26 = sbr.rel (0) target = $region21
    $region20: #{seq_model_forward.1} parent=1 // pred_region
      _
    $region21: #{seq_model_forward.1} parent=1 // pred_fallthru
      _
    // Predicated region
    $region22: #{seq_model_forward.1} parent=1 // pred_check
      _
    $region23: #{seq_model_forward.1} parent=1 // pred_check_branch
      %28 = sbr.rel (0) target = $region25
    $region24: #{seq_model_forward.1} parent=1 // pred_region
      _
    $region25: #{seq_model_forward.1} parent=1 // pred_fallthru
      _
    // Predicated region
    $region26: #{seq_model_forward.1} parent=1 // pred_check
      _
    $region27: #{seq_model_forward.1} parent=1 // pred_check_branch
      %30 = sbr.rel (0) target = $region29
    $region28: #{seq_model_forward.1} parent=1 // pred_region
      _
    $region29: #{seq_model_forward.1} parent=1 // pred_fallthru
      _
    // Predicated region
    $region30: #{seq_model_forward.1} parent=1 // pred_check
      _
    $region31: #{seq_model_forward.1} parent=1 // pred_check_branch
      %32 = sbr.rel (0) target = $region33
    $region32: #{seq_model_forward.1} parent=1 // pred_region
      _
    $region33: #{seq_model_forward.1} parent=1 // pred_fallthru
      _
    // Predicated region
    $region34: #{seq_model_forward.1} parent=1 // pred_check
      _
    $region35: #{seq_model_forward.1} parent=1 // pred_check_branch
      %34 = sbr.rel (0) target = $region37
    $region36: #{seq_model_forward.1} parent=1 // pred_region
      _
    $region37: #{seq_model_forward.1} parent=1 // pred_fallthru
      _
    // Predicated region
    $region38: #{seq_model_forward.1} parent=1 // pred_check
      _
    $region39: #{seq_model_forward.1} parent=1 // pred_check_branch
      %36 = sbr.rel (0) target = $region41
    $region40: #{seq_model_forward.1} parent=1 // pred_region
      _
    $region41: #{seq_model_forward.1} parent=1 // pred_fallthru
      _
    // Predicated region
    $region42: #{seq_model_forward.1} parent=1 // pred_check
      _
    $region43: #{seq_model_forward.1} parent=1 // pred_check_branch
      %38 = sbr.rel (0) target = $region45
    $region44: #{seq_model_forward.1} parent=1 // pred_region
      _
    $region45: #{seq_model_forward.1} parent=1 // pred_fallthru
      _
    %v39 = vld [vmem:[%s0] sm:$0x1]
    %v40 = vld [vmem:[%s0 + $0x8] sm:$0x1]
    %v41 = vld [vmem:[%s0 + $0x1] sm:$0x1]
    %v42 = vld [vmem:[%s0 + $0x9] sm:$0x1]
    %v43 = vld [vmem:[%s0 + $0x2] sm:$0x1]
    %v44 = vld [vmem:[%s0 + $0xa] sm:$0x1]
    %v45 = vld [vmem:[%s0 + $0x3] sm:$0x1]
    %v46 = vld [vmem:[%s0 + $0xb] sm:$0x1]
    %v47 = vld [vmem:[%s0 + $0x4] sm:$0x1]
    %v48 = vld [vmem:[%s0 + $0xc] sm:$0x1]
    %v49 = vld [vmem:[%s0 + $0x5] sm:$0x1]
    %v50 = vld [vmem:[%s0 + $0xd] sm:$0x1]
    %v51 = vld [vmem:[%s0 + $0x6] sm:$0x1]
    %v52 = vld [vmem:[%s0 + $0xe] sm:$0x1]
    %v53 = vld [vmem:[%s0 + $0x7] sm:$0x1]
    %v54 = vld [vmem:[%s0 + $0xf] sm:$0x1]
    %v55 = vld [vmem:[%s3] sm:$0xff]
    %v56 = vld [vmem:[%s3 + $0x8] sm:$0xff]
    %v57 = vld [vmem:[%s4] sm:$0xff]
    %v58 = vld [vmem:[%s4 + $0x8] sm:$0xff]
    %v59 = vld [vmem:[%s4 + $0x10] sm:$0xff]
    %v60 = vld [vmem:[%s4 + $0x18] sm:$0xff]
    %v61 = vld [vmem:[%s5] sm:$0x1]
    %v62 = vld [vmem:[%s1] sm:$0x1]
    %v63 = vld [vmem:[%s1 + $0x2] sm:$0x1]
    %v64 = vld [vmem:[%s2] sm:$0x1]
    %v65 = vld [vmem:[%s2 + $0x2] sm:$0x1]
    %v68 = vrot.slane %v63, 7
    %vm69 = vcmask 1041409
    %v70 = vsel %vm69, %v68, %v62
    %vm71 = vcmask 261120
    %v72 = vsel %vm71, %v70, 0
    %74 = vmatpush.msra.mxu0 0.0
    %75 = vmatpush.msra.mxu0 0.0
    %76 = vmatpush.msra.mxu0 0.0
    %77 = vmatpush.msra.mxu0 0.0
    %78 = vmatpush.msra.mxu0 0.0
    %79 = vmatpush.msra.mxu0 0.0
    %80 = vmatpush.msra.mxu0 0.0
    %81 = vmatpush.msra.mxu0 0.0
    %82 = vmatpush.msra.mxu0 0.0
    %83 = vmatpush.msra.mxu0 0.0
    %84 = vmatpush.msra.mxu0 0.0
    %85 = vmatpush.msra.mxu0 0.0
    %86 = vmatpush.msra.mxu0 %v60
    %87 = vmatpush.msra.mxu0 %v59
    %88 = vmatpush.msra.mxu0 %v58
    %89 = vmatpush.msra.mxu0 %v57
    %90 = vmatmul.f32.gmra.mxu0 %v72
    %v91 = vpop.f32.mrf.mxu0
    %v92 = vadd.f32 0.0, %v91
    %93 = vdwg.mxu0
    %v96 = vrot.slane %v40, 7
    %v97 = vsel %vm69, %v96, %v39
    %vm98 = vcmask 130048
    %v99 = vsel %vm98, %v97, 0
    %101 = vmatpush.msra.mxu0 0.0
    %102 = vmatpush.msra.mxu0 0.0
    %103 = vmatpush.msra.mxu0 0.0
    %104 = vmatpush.msra.mxu0 0.0
    %105 = vmatpush.msra.mxu0 0.0
    %106 = vmatpush.msra.mxu0 0.0
    %107 = vmatpush.msra.mxu0 0.0
    %108 = vmatpush.msra.mxu0 0.0
    %109 = vmatpush.msra.mxu0 0.0
    %110 = vmatpush.msra.mxu0 0.0
    %111 = vmatpush.msra.mxu0 0.0
    %112 = vmatpush.msra.mxu0 0.0
    %113 = vmatpush.msra.mxu0 0.0
    %114 = vmatpush.msra.mxu0 0.0
    %115 = vmatpush.msra.mxu0 %v56
    %116 = vmatpush.msra.mxu0 %v55
    %117 = vmatmul.f32.gmra.mxu0 %v99
    %v118 = vpop.f32.mrf.mxu0
    %v119 = vadd.f32 %v92, %v118
    %120 = vdwg.mxu0
    %v122 = vperm.slane %v61, 0
    %v124 = vadd.f32 %v119, %v122
    %v125 = vxor.u32 %v124, 2147483648
    %v126 = vmul.f32 %v125, 1.442695
    %v127 = vpow.pop %v126
    %v128 = vadd.f32 %v127, 1.0
    %v129 = vrcp.pop %v128
    %v130 = vmul.f32 %v128, %v129
    %v131 = vsub.f32 1.0, %v130
    %v132 = vmul.f32 %v129, %v131
    %v133 = vadd.f32 %v129, %v132
    %vm134 = vweird.f32 %v128
    %vm135 = vweird.f32 %v129
    %vm136 = vmor %vm134, %vm135
    %v137 = vsel %vm136, %v129, %v133
    %v138 = vand.u32 2147483647, %v128
    %vm139 = vcmp.eq.f32.partialorder %v138, 8.507059e+37
    %v140 = vand.u32 %v128, 2147483648
    %v141 = vor.u32 1.1754944e-38, %v140
    %v142 = vsel %vm139, %v141, %v137
    %v143 = vmul.f32 1.0, %v142
    %v144 = vtanh.pop %v124
    %v147 = vrot.slane %v65, 7
    %v148 = vsel %vm69, %v147, %v64
    %149 = vrot.lane.b32.xlu0 %v148, 32
    %v150 = vpop.permute.xlu0 %149
    %v152 = vmul.f32 %v143, %v150
    %154 = vrot.lane.b32.xlu0 %v144, 64
    %v155 = vpop.permute.xlu0 %154
    %v157 = vmul.f32 %v143, %v155
    %159 = vrot.lane.b32.xlu0 %v157, 32
    %v160 = vpop.permute.xlu0 %159
    %v162 = vadd.f32 %v152, %v160
    %v163 = vtanh.pop %v162
    %165 = vrot.lane.b32.xlu0 %v163, 64
    %v166 = vpop.permute.xlu0 %165
    %v168 = vmul.f32 %v143, %v166
    %170 = vrot.lane.b32.xlu0 %v168, 32
    %v171 = vpop.permute.xlu0 %170
    %v172 = vsel %vm71, %v171, 0
    %174 = vmatpush.msra.mxu0 0.0
    %175 = vmatpush.msra.mxu0 0.0
    %176 = vmatpush.msra.mxu0 0.0
    %177 = vmatpush.msra.mxu0 0.0
    %178 = vmatpush.msra.mxu0 0.0
    %179 = vmatpush.msra.mxu0 0.0
    %180 = vmatpush.msra.mxu0 0.0
    %181 = vmatpush.msra.mxu0 0.0
    %182 = vmatpush.msra.mxu0 0.0
    %183 = vmatpush.msra.mxu0 0.0
    %184 = vmatpush.msra.mxu0 0.0
    %185 = vmatpush.msra.mxu0 0.0
    %186 = vmatpush.msra.mxu0 %v60
    %187 = vmatpush.msra.mxu0 %v59
    %188 = vmatpush.msra.mxu0 %v58
    %189 = vmatpush.msra.mxu0 %v57
    %190 = vmatmul.f32.gmra.mxu0 %v172
    %v191 = vpop.f32.mrf.mxu0
    %v192 = vadd.f32 0.0, %v191
    %193 = vdwg.mxu0
    %v196 = vrot.slane %v42, 7
    %v197 = vsel %vm69, %v196, %v41
    %v198 = vsel %vm98, %v197, 0
    %200 = vmatpush.msra.mxu0 0.0
    %201 = vmatpush.msra.mxu0 0.0
    %202 = vmatpush.msra.mxu0 0.0
    %203 = vmatpush.msra.mxu0 0.0
    %204 = vmatpush.msra.mxu0 0.0
    %205 = vmatpush.msra.mxu0 0.0
    %206 = vmatpush.msra.mxu0 0.0
    %207 = vmatpush.msra.mxu0 0.0
    %208 = vmatpush.msra.mxu0 0.0
    %209 = vmatpush.msra.mxu0 0.0
    %210 = vmatpush.msra.mxu0 0.0
    %211 = vmatpush.msra.mxu0 0.0
    %212 = vmatpush.msra.mxu0 0.0
    %213 = vmatpush.msra.mxu0 0.0
    %214 = vmatpush.msra.mxu0 %v56
    %215 = vmatpush.msra.mxu0 %v55
    %216 = vmatmul.f32.gmra.mxu0 %v198
    %v217 = vpop.f32.mrf.mxu0
    %v218 = vadd.f32 %v192, %v217
    %219 = vdwg.mxu0
    %v220 = vadd.f32 %v218, %v122
    %v221 = vxor.u32 %v220, 2147483648
    %v222 = vmul.f32 %v221, 1.442695
    %v223 = vpow.pop %v222
    %v224 = vadd.f32 %v223, 1.0
    %v225 = vrcp.pop %v224
    %v226 = vmul.f32 %v224, %v225
    %v227 = vsub.f32 1.0, %v226
    %v228 = vmul.f32 %v225, %v227
    %v229 = vadd.f32 %v225, %v228
    %vm230 = vweird.f32 %v224
    %vm231 = vweird.f32 %v225
    %vm232 = vmor %vm230, %vm231
    %v233 = vsel %vm232, %v225, %v229
    %v234 = vand.u32 2147483647, %v224
    %vm235 = vcmp.eq.f32.partialorder %v234, 8.507059e+37
    %v236 = vand.u32 %v224, 2147483648
    %v237 = vor.u32 1.1754944e-38, %v236
    %v238 = vsel %vm235, %v237, %v233
    %v239 = vmul.f32 1.0, %v238
    %v240 = vtanh.pop %v220
    %v241 = vmul.f32 %v239, %v162
    %243 = vrot.lane.b32.xlu0 %v240, 64
    %v244 = vpop.permute.xlu0 %243
    %v246 = vmul.f32 %v239, %v244
    %248 = vrot.lane.b32.xlu0 %v246, 32
    %v249 = vpop.permute.xlu0 %248
    %v251 = vadd.f32 %v241, %v249
    %v252 = vtanh.pop %v251
    %254 = vrot.lane.b32.xlu0 %v252, 64
    %v255 = vpop.permute.xlu0 %254
    %v257 = vmul.f32 %v239, %v255
    %259 = vrot.lane.b32.xlu0 %v257, 32
    %v260 = vpop.permute.xlu0 %259
    %v261 = vsel %vm71, %v260, 0
    %263 = vmatpush.msra.mxu0 0.0
    %264 = vmatpush.msra.mxu0 0.0
    %265 = vmatpush.msra.mxu0 0.0
    %266 = vmatpush.msra.mxu0 0.0
    %267 = vmatpush.msra.mxu0 0.0
    %268 = vmatpush.msra.mxu0 0.0
    %269 = vmatpush.msra.mxu0 0.0
    %270 = vmatpush.msra.mxu0 0.0
    %271 = vmatpush.msra.mxu0 0.0
    %272 = vmatpush.msra.mxu0 0.0
    %273 = vmatpush.msra.mxu0 0.0
    %274 = vmatpush.msra.mxu0 0.0
    %275 = vmatpush.msra.mxu0 %v60
    %276 = vmatpush.msra.mxu0 %v59
    %277 = vmatpush.msra.mxu0 %v58
    %278 = vmatpush.msra.mxu0 %v57
    %279 = vmatmul.f32.gmra.mxu0 %v261
    %v280 = vpop.f32.mrf.mxu0
    %v281 = vadd.f32 0.0, %v280
    %282 = vdwg.mxu0
    %v285 = vrot.slane %v44, 7
    %v286 = vsel %vm69, %v285, %v43
    %v287 = vsel %vm98, %v286, 0
    %289 = vmatpush.msra.mxu0 0.0
    %290 = vmatpush.msra.mxu0 0.0
    %291 = vmatpush.msra.mxu0 0.0
    %292 = vmatpush.msra.mxu0 0.0
    %293 = vmatpush.msra.mxu0 0.0
    %294 = vmatpush.msra.mxu0 0.0
    %295 = vmatpush.msra.mxu0 0.0
    %296 = vmatpush.msra.mxu0 0.0
    %297 = vmatpush.msra.mxu0 0.0
    %298 = vmatpush.msra.mxu0 0.0
    %299 = vmatpush.msra.mxu0 0.0
    %300 = vmatpush.msra.mxu0 0.0
    %301 = vmatpush.msra.mxu0 0.0
    %302 = vmatpush.msra.mxu0 0.0
    %303 = vmatpush.msra.mxu0 %v56
    %304 = vmatpush.msra.mxu0 %v55
    %305 = vmatmul.f32.gmra.mxu0 %v287
    %v306 = vpop.f32.mrf.mxu0
    %v307 = vadd.f32 %v281, %v306
    %308 = vdwg.mxu0
    %v309 = vadd.f32 %v307, %v122
    %v310 = vxor.u32 %v309, 2147483648
    %v311 = vmul.f32 %v310, 1.442695
    %v312 = vpow.pop %v311
    %v313 = vadd.f32 %v312, 1.0
    %v314 = vrcp.pop %v313
    %v315 = vmul.f32 %v313, %v314
    %v316 = vsub.f32 1.0, %v315
    %v317 = vmul.f32 %v314, %v316
    %v318 = vadd.f32 %v314, %v317
    %vm319 = vweird.f32 %v313
    %vm320 = vweird.f32 %v314
    %vm321 = vmor %vm319, %vm320
    %v322 = vsel %vm321, %v314, %v318
    %v323 = vand.u32 2147483647, %v313
    %vm324 = vcmp.eq.f32.partialorder %v323, 8.507059e+37
    %v325 = vand.u32 %v313, 2147483648
    %v326 = vor.u32 1.1754944e-38, %v325
    %v327 = vsel %vm324, %v326, %v322
    %v328 = vmul.f32 1.0, %v327
    %v329 = vtanh.pop %v309
    %v330 = vmul.f32 %v328, %v251
    %332 = vrot.lane.b32.xlu0 %v329, 64
    %v333 = vpop.permute.xlu0 %332
    %v335 = vmul.f32 %v328, %v333
    %337 = vrot.lane.b32.xlu0 %v335, 32
    %v338 = vpop.permute.xlu0 %337
    %v340 = vadd.f32 %v330, %v338
    %v341 = vtanh.pop %v340
    %343 = vrot.lane.b32.xlu0 %v341, 64
    %v344 = vpop.permute.xlu0 %343
    %v346 = vmul.f32 %v328, %v344
    %348 = vrot.lane.b32.xlu0 %v346, 32
    %v349 = vpop.permute.xlu0 %348
    %v350 = vsel %vm71, %v349, 0
    %352 = vmatpush.msra.mxu0 0.0
    %353 = vmatpush.msra.mxu0 0.0
    %354 = vmatpush.msra.mxu0 0.0
    %355 = vmatpush.msra.mxu0 0.0
    %356 = vmatpush.msra.mxu0 0.0
    %357 = vmatpush.msra.mxu0 0.0
    %358 = vmatpush.msra.mxu0 0.0
    %359 = vmatpush.msra.mxu0 0.0
    %360 = vmatpush.msra.mxu0 0.0
    %361 = vmatpush.msra.mxu0 0.0
    %362 = vmatpush.msra.mxu0 0.0
    %363 = vmatpush.msra.mxu0 0.0
    %364 = vmatpush.msra.mxu0 %v60
    %365 = vmatpush.msra.mxu0 %v59
    %366 = vmatpush.msra.mxu0 %v58
    %367 = vmatpush.msra.mxu0 %v57
    %368 = vmatmul.f32.gmra.mxu0 %v350
    %v369 = vpop.f32.mrf.mxu0
    %v370 = vadd.f32 0.0, %v369
    %371 = vdwg.mxu0
    %v374 = vrot.slane %v46, 7
    %v375 = vsel %vm69, %v374, %v45
    %v376 = vsel %vm98, %v375, 0
    %378 = vmatpush.msra.mxu0 0.0
    %379 = vmatpush.msra.mxu0 0.0
    %380 = vmatpush.msra.mxu0 0.0
    %381 = vmatpush.msra.mxu0 0.0
    %382 = vmatpush.msra.mxu0 0.0
    %383 = vmatpush.msra.mxu0 0.0
    %384 = vmatpush.msra.mxu0 0.0
    %385 = vmatpush.msra.mxu0 0.0
    %386 = vmatpush.msra.mxu0 0.0
    %387 = vmatpush.msra.mxu0 0.0
    %388 = vmatpush.msra.mxu0 0.0
    %389 = vmatpush.msra.mxu0 0.0
    %390 = vmatpush.msra.mxu0 0.0
    %391 = vmatpush.msra.mxu0 0.0
    %392 = vmatpush.msra.mxu0 %v56
    %393 = vmatpush.msra.mxu0 %v55
    %394 = vmatmul.f32.gmra.mxu0 %v376
    %v395 = vpop.f32.mrf.mxu0
    %v396 = vadd.f32 %v370, %v395
    %397 = vdwg.mxu0
    %v398 = vadd.f32 %v396, %v122
    %v399 = vxor.u32 %v398, 2147483648
    %v400 = vmul.f32 %v399, 1.442695
    %v401 = vpow.pop %v400
    %v402 = vadd.f32 %v401, 1.0
    %v403 = vrcp.pop %v402
    %v404 = vmul.f32 %v402, %v403
    %v405 = vsub.f32 1.0, %v404
    %v406 = vmul.f32 %v403, %v405
    %v407 = vadd.f32 %v403, %v406
    %vm408 = vweird.f32 %v402
    %vm409 = vweird.f32 %v403
    %vm410 = vmor %vm408, %vm409
    %v411 = vsel %vm410, %v403, %v407
    %v412 = vand.u32 2147483647, %v402
    %vm413 = vcmp.eq.f32.partialorder %v412, 8.507059e+37
    %v414 = vand.u32 %v402, 2147483648
    %v415 = vor.u32 1.1754944e-38, %v414
    %v416 = vsel %vm413, %v415, %v411
    %v417 = vmul.f32 1.0, %v416
    %v418 = vtanh.pop %v398
    %v419 = vmul.f32 %v417, %v340
    %421 = vrot.lane.b32.xlu0 %v418, 64
    %v422 = vpop.permute.xlu0 %421
    %v424 = vmul.f32 %v417, %v422
    %426 = vrot.lane.b32.xlu0 %v424, 32
    %v427 = vpop.permute.xlu0 %426
    %v429 = vadd.f32 %v419, %v427
    %v430 = vtanh.pop %v429
    %432 = vrot.lane.b32.xlu0 %v430, 64
    %v433 = vpop.permute.xlu0 %432
    %v435 = vmul.f32 %v417, %v433
    %437 = vrot.lane.b32.xlu0 %v435, 32
    %v438 = vpop.permute.xlu0 %437
    %v439 = vsel %vm71, %v438, 0
    %441 = vmatpush.msra.mxu0 0.0
    %442 = vmatpush.msra.mxu0 0.0
    %443 = vmatpush.msra.mxu0 0.0
    %444 = vmatpush.msra.mxu0 0.0
    %445 = vmatpush.msra.mxu0 0.0
    %446 = vmatpush.msra.mxu0 0.0
    %447 = vmatpush.msra.mxu0 0.0
    %448 = vmatpush.msra.mxu0 0.0
    %449 = vmatpush.msra.mxu0 0.0
    %450 = vmatpush.msra.mxu0 0.0
    %451 = vmatpush.msra.mxu0 0.0
    %452 = vmatpush.msra.mxu0 0.0
    %453 = vmatpush.msra.mxu0 %v60
    %454 = vmatpush.msra.mxu0 %v59
    %455 = vmatpush.msra.mxu0 %v58
    %456 = vmatpush.msra.mxu0 %v57
    %457 = vmatmul.f32.gmra.mxu0 %v439
    %v458 = vpop.f32.mrf.mxu0
    %v459 = vadd.f32 0.0, %v458
    %460 = vdwg.mxu0
    %v463 = vrot.slane %v48, 7
    %v464 = vsel %vm69, %v463, %v47
    %v465 = vsel %vm98, %v464, 0
    %467 = vmatpush.msra.mxu0 0.0
    %468 = vmatpush.msra.mxu0 0.0
    %469 = vmatpush.msra.mxu0 0.0
    %470 = vmatpush.msra.mxu0 0.0
    %471 = vmatpush.msra.mxu0 0.0
    %472 = vmatpush.msra.mxu0 0.0
    %473 = vmatpush.msra.mxu0 0.0
    %474 = vmatpush.msra.mxu0 0.0
    %475 = vmatpush.msra.mxu0 0.0
    %476 = vmatpush.msra.mxu0 0.0
    %477 = vmatpush.msra.mxu0 0.0
    %478 = vmatpush.msra.mxu0 0.0
    %479 = vmatpush.msra.mxu0 0.0
    %480 = vmatpush.msra.mxu0 0.0
    %481 = vmatpush.msra.mxu0 %v56
    %482 = vmatpush.msra.mxu0 %v55
    %483 = vmatmul.f32.gmra.mxu0 %v465
    %v484 = vpop.f32.mrf.mxu0
    %v485 = vadd.f32 %v459, %v484
    %486 = vdwg.mxu0
    %v487 = vadd.f32 %v485, %v122
    %v488 = vxor.u32 %v487, 2147483648
    %v489 = vmul.f32 %v488, 1.442695
    %v490 = vpow.pop %v489
    %v491 = vadd.f32 %v490, 1.0
    %v492 = vrcp.pop %v491
    %v493 = vmul.f32 %v491, %v492
    %v494 = vsub.f32 1.0, %v493
    %v495 = vmul.f32 %v492, %v494
    %v496 = vadd.f32 %v492, %v495
    %vm497 = vweird.f32 %v491
    %vm498 = vweird.f32 %v492
    %vm499 = vmor %vm497, %vm498
    %v500 = vsel %vm499, %v492, %v496
    %v501 = vand.u32 2147483647, %v491
    %vm502 = vcmp.eq.f32.partialorder %v501, 8.507059e+37
    %v503 = vand.u32 %v491, 2147483648
    %v504 = vor.u32 1.1754944e-38, %v503
    %v505 = vsel %vm502, %v504, %v500
    %v506 = vmul.f32 1.0, %v505
    %v507 = vtanh.pop %v487
    %v508 = vmul.f32 %v506, %v429
    %510 = vrot.lane.b32.xlu0 %v507, 64
    %v511 = vpop.permute.xlu0 %510
    %v513 = vmul.f32 %v506, %v511
    %515 = vrot.lane.b32.xlu0 %v513, 32
    %v516 = vpop.permute.xlu0 %515
    %v518 = vadd.f32 %v508, %v516
    %v519 = vtanh.pop %v518
    %521 = vrot.lane.b32.xlu0 %v519, 64
    %v522 = vpop.permute.xlu0 %521
    %v524 = vmul.f32 %v506, %v522
    %526 = vrot.lane.b32.xlu0 %v524, 32
    %v527 = vpop.permute.xlu0 %526
    %v528 = vsel %vm71, %v527, 0
    %530 = vmatpush.msra.mxu0 0.0
    %531 = vmatpush.msra.mxu0 0.0
    %532 = vmatpush.msra.mxu0 0.0
    %533 = vmatpush.msra.mxu0 0.0
    %534 = vmatpush.msra.mxu0 0.0
    %535 = vmatpush.msra.mxu0 0.0
    %536 = vmatpush.msra.mxu0 0.0
    %537 = vmatpush.msra.mxu0 0.0
    %538 = vmatpush.msra.mxu0 0.0
    %539 = vmatpush.msra.mxu0 0.0
    %540 = vmatpush.msra.mxu0 0.0
    %541 = vmatpush.msra.mxu0 0.0
    %542 = vmatpush.msra.mxu0 %v60
    %543 = vmatpush.msra.mxu0 %v59
    %544 = vmatpush.msra.mxu0 %v58
    %545 = vmatpush.msra.mxu0 %v57
    %546 = vmatmul.f32.gmra.mxu0 %v528
    %v547 = vpop.f32.mrf.mxu0
    %v548 = vadd.f32 0.0, %v547
    %549 = vdwg.mxu0
    %v552 = vrot.slane %v50, 7
    %v553 = vsel %vm69, %v552, %v49
    %v554 = vsel %vm98, %v553, 0
    %556 = vmatpush.msra.mxu0 0.0
    %557 = vmatpush.msra.mxu0 0.0
    %558 = vmatpush.msra.mxu0 0.0
    %559 = vmatpush.msra.mxu0 0.0
    %560 = vmatpush.msra.mxu0 0.0
    %561 = vmatpush.msra.mxu0 0.0
    %562 = vmatpush.msra.mxu0 0.0
    %563 = vmatpush.msra.mxu0 0.0
    %564 = vmatpush.msra.mxu0 0.0
    %565 = vmatpush.msra.mxu0 0.0
    %566 = vmatpush.msra.mxu0 0.0
    %567 = vmatpush.msra.mxu0 0.0
    %568 = vmatpush.msra.mxu0 0.0
    %569 = vmatpush.msra.mxu0 0.0
    %570 = vmatpush.msra.mxu0 %v56
    %571 = vmatpush.msra.mxu0 %v55
    %572 = vmatmul.f32.gmra.mxu0 %v554
    %v573 = vpop.f32.mrf.mxu0
    %v574 = vadd.f32 %v548, %v573
    %575 = vdwg.mxu0
    %v576 = vadd.f32 %v574, %v122
    %v577 = vxor.u32 %v576, 2147483648
    %v578 = vmul.f32 %v577, 1.442695
    %v579 = vpow.pop %v578
    %v580 = vadd.f32 %v579, 1.0
    %v581 = vrcp.pop %v580
    %v582 = vmul.f32 %v580, %v581
    %v583 = vsub.f32 1.0, %v582
    %v584 = vmul.f32 %v581, %v583
    %v585 = vadd.f32 %v581, %v584
    %vm586 = vweird.f32 %v580
    %vm587 = vweird.f32 %v581
    %vm588 = vmor %vm586, %vm587
    %v589 = vsel %vm588, %v581, %v585
    %v590 = vand.u32 2147483647, %v580
    %vm591 = vcmp.eq.f32.partialorder %v590, 8.507059e+37
    %v592 = vand.u32 %v580, 2147483648
    %v593 = vor.u32 1.1754944e-38, %v592
    %v594 = vsel %vm591, %v593, %v589
    %v595 = vmul.f32 1.0, %v594
    %v596 = vtanh.pop %v576
    %v597 = vmul.f32 %v595, %v518
    %599 = vrot.lane.b32.xlu0 %v596, 64
    %v600 = vpop.permute.xlu0 %599
    %v602 = vmul.f32 %v595, %v600
    %604 = vrot.lane.b32.xlu0 %v602, 32
    %v605 = vpop.permute.xlu0 %604
    %v607 = vadd.f32 %v597, %v605
    %v608 = vtanh.pop %v607
    %610 = vrot.lane.b32.xlu0 %v608, 64
    %v611 = vpop.permute.xlu0 %610
    %v613 = vmul.f32 %v595, %v611
    %615 = vrot.lane.b32.xlu0 %v613, 32
    %v616 = vpop.permute.xlu0 %615
    %v617 = vsel %vm71, %v616, 0
    %619 = vmatpush.msra.mxu0 0.0
    %620 = vmatpush.msra.mxu0 0.0
    %621 = vmatpush.msra.mxu0 0.0
    %622 = vmatpush.msra.mxu0 0.0
    %623 = vmatpush.msra.mxu0 0.0
    %624 = vmatpush.msra.mxu0 0.0
    %625 = vmatpush.msra.mxu0 0.0
    %626 = vmatpush.msra.mxu0 0.0
    %627 = vmatpush.msra.mxu0 0.0
    %628 = vmatpush.msra.mxu0 0.0
    %629 = vmatpush.msra.mxu0 0.0
    %630 = vmatpush.msra.mxu0 0.0
    %631 = vmatpush.msra.mxu0 %v60
    %632 = vmatpush.msra.mxu0 %v59
    %633 = vmatpush.msra.mxu0 %v58
    %634 = vmatpush.msra.mxu0 %v57
    %635 = vmatmul.f32.gmra.mxu0 %v617
    %v636 = vpop.f32.mrf.mxu0
    %v637 = vadd.f32 0.0, %v636
    %638 = vdwg.mxu0
    %v641 = vrot.slane %v52, 7
    %v642 = vsel %vm69, %v641, %v51
    %v643 = vsel %vm98, %v642, 0
    %645 = vmatpush.msra.mxu0 0.0
    %646 = vmatpush.msra.mxu0 0.0
    %647 = vmatpush.msra.mxu0 0.0
    %648 = vmatpush.msra.mxu0 0.0
    %649 = vmatpush.msra.mxu0 0.0
    %650 = vmatpush.msra.mxu0 0.0
    %651 = vmatpush.msra.mxu0 0.0
    %652 = vmatpush.msra.mxu0 0.0
    %653 = vmatpush.msra.mxu0 0.0
    %654 = vmatpush.msra.mxu0 0.0
    %655 = vmatpush.msra.mxu0 0.0
    %656 = vmatpush.msra.mxu0 0.0
    %657 = vmatpush.msra.mxu0 0.0
    %658 = vmatpush.msra.mxu0 0.0
    %659 = vmatpush.msra.mxu0 %v56
    %660 = vmatpush.msra.mxu0 %v55
    %661 = vmatmul.f32.gmra.mxu0 %v643
    %v662 = vpop.f32.mrf.mxu0
    %v663 = vadd.f32 %v637, %v662
    %664 = vdwg.mxu0
    %v665 = vadd.f32 %v663, %v122
    %v666 = vxor.u32 %v665, 2147483648
    %v667 = vmul.f32 %v666, 1.442695
    %v668 = vpow.pop %v667
    %v669 = vadd.f32 %v668, 1.0
    %v670 = vrcp.pop %v669
    %v671 = vmul.f32 %v669, %v670
    %v672 = vsub.f32 1.0, %v671
    %v673 = vmul.f32 %v670, %v672
    %v674 = vadd.f32 %v670, %v673
    %vm675 = vweird.f32 %v669
    %vm676 = vweird.f32 %v670
    %vm677 = vmor %vm675, %vm676
    %v678 = vsel %vm677, %v670, %v674
    %v679 = vand.u32 2147483647, %v669
    %vm680 = vcmp.eq.f32.partialorder %v679, 8.507059e+37
    %v681 = vand.u32 %v669, 2147483648
    %v682 = vor.u32 1.1754944e-38, %v681
    %v683 = vsel %vm680, %v682, %v678
    %v684 = vmul.f32 1.0, %v683
    %v685 = vtanh.pop %v665
    %v686 = vmul.f32 %v684, %v607
    %688 = vrot.lane.b32.xlu0 %v685, 64
    %v689 = vpop.permute.xlu0 %688
    %v691 = vmul.f32 %v684, %v689
    %693 = vrot.lane.b32.xlu0 %v691, 32
    %v694 = vpop.permute.xlu0 %693
    %v696 = vadd.f32 %v686, %v694
    %v697 = vtanh.pop %v696
    %699 = vrot.lane.b32.xlu0 %v697, 64
    %v700 = vpop.permute.xlu0 %699
    %v702 = vmul.f32 %v684, %v700
    %704 = vrot.lane.b32.xlu0 %v702, 32
    %v705 = vpop.permute.xlu0 %704
    %v706 = vsel %vm71, %v705, 0
    %708 = vmatpush.msra.mxu0 0.0
    %709 = vmatpush.msra.mxu0 0.0
    %710 = vmatpush.msra.mxu0 0.0
    %711 = vmatpush.msra.mxu0 0.0
    %712 = vmatpush.msra.mxu0 0.0
    %713 = vmatpush.msra.mxu0 0.0
    %714 = vmatpush.msra.mxu0 0.0
    %715 = vmatpush.msra.mxu0 0.0
    %716 = vmatpush.msra.mxu0 0.0
    %717 = vmatpush.msra.mxu0 0.0
    %718 = vmatpush.msra.mxu0 0.0
    %719 = vmatpush.msra.mxu0 0.0
    %720 = vmatpush.msra.mxu0 %v60
    %721 = vmatpush.msra.mxu0 %v59
    %722 = vmatpush.msra.mxu0 %v58
    %723 = vmatpush.msra.mxu0 %v57
    %724 = vmatmul.f32.gmra.mxu0 %v706
    %v725 = vpop.f32.mrf.mxu0
    %v726 = vadd.f32 0.0, %v725
    %727 = vdwg.mxu0
    %v730 = vrot.slane %v54, 7
    %v731 = vsel %vm69, %v730, %v53
    %v732 = vsel %vm98, %v731, 0
    %734 = vmatpush.msra.mxu0 0.0
    %735 = vmatpush.msra.mxu0 0.0
    %736 = vmatpush.msra.mxu0 0.0
    %737 = vmatpush.msra.mxu0 0.0
    %738 = vmatpush.msra.mxu0 0.0
    %739 = vmatpush.msra.mxu0 0.0
    %740 = vmatpush.msra.mxu0 0.0
    %741 = vmatpush.msra.mxu0 0.0
    %742 = vmatpush.msra.mxu0 0.0
    %743 = vmatpush.msra.mxu0 0.0
    %744 = vmatpush.msra.mxu0 0.0
    %745 = vmatpush.msra.mxu0 0.0
    %746 = vmatpush.msra.mxu0 0.0
    %747 = vmatpush.msra.mxu0 0.0
    %748 = vmatpush.msra.mxu0 %v56
    %749 = vmatpush.msra.mxu0 %v55
    %750 = vmatmul.f32.gmra.mxu0 %v732
    %v751 = vpop.f32.mrf.mxu0
    %v752 = vadd.f32 %v726, %v751
    %753 = vdwg.mxu0
    %v754 = vadd.f32 %v752, %v122
    %v755 = vxor.u32 %v754, 2147483648
    %v756 = vmul.f32 %v755, 1.442695
    %v757 = vpow.pop %v756
    %v758 = vadd.f32 %v757, 1.0
    %v759 = vrcp.pop %v758
    %v760 = vmul.f32 %v758, %v759
    %v761 = vsub.f32 1.0, %v760
    %v762 = vmul.f32 %v759, %v761
    %v763 = vadd.f32 %v759, %v762
    %vm764 = vweird.f32 %v758
    %vm765 = vweird.f32 %v759
    %vm766 = vmor %vm764, %vm765
    %v767 = vsel %vm766, %v759, %v763
    %v768 = vand.u32 2147483647, %v758
    %vm769 = vcmp.eq.f32.partialorder %v768, 8.507059e+37
    %v770 = vand.u32 %v758, 2147483648
    %v771 = vor.u32 1.1754944e-38, %v770
    %v772 = vsel %vm769, %v771, %v767
    %v773 = vmul.f32 1.0, %v772
    %v774 = vtanh.pop %v754
    %v775 = vmul.f32 %v773, %v696
    %777 = vrot.lane.b32.xlu0 %v774, 64
    %v778 = vpop.permute.xlu0 %777
    %v780 = vmul.f32 %v773, %v778
    %782 = vrot.lane.b32.xlu0 %v780, 32
    %v783 = vpop.permute.xlu0 %782
    %v785 = vadd.f32 %v775, %v783
    %v786 = vtanh.pop %v785
    %788 = vrot.lane.b32.xlu0 %v786, 64
    %v789 = vpop.permute.xlu0 %788
    %v791 = vmul.f32 %v773, %v789
    %v792 = vld [vmem:[%s6] sm:$0xff]
    %v793 = vld [vmem:[%s6 + $0x8] sm:$0xff]
    %v794 = vld [vmem:[%s6 + $0x10] sm:$0xff]
    %v795 = vld [vmem:[%s6 + $0x18] sm:$0xff]
    %v796 = vld [vmem:[%s7] sm:$0xff]
    %v797 = vld [vmem:[%s7 + $0x8] sm:$0xff]
    %v798 = vld [vmem:[%s7 + $0x10] sm:$0xff]
    %v799 = vld [vmem:[%s7 + $0x18] sm:$0xff]
    %v800 = vld [vmem:[%s8] sm:$0x1]
    %v801 = vld [vmem:[%s1 + $0x1] sm:$0x1]
    %v802 = vld [vmem:[%s1 + $0x3] sm:$0x1]
    %v803 = vld [vmem:[%s2 + $0x1] sm:$0x1]
    %v804 = vld [vmem:[%s2 + $0x3] sm:$0x1]
    %v807 = vrot.slane %v802, 7
    %v808 = vsel %vm69, %v807, %v801
    %v809 = vsel %vm71, %v808, 0
    %811 = vmatpush.msra.mxu0 0.0
    %812 = vmatpush.msra.mxu0 0.0
    %813 = vmatpush.msra.mxu0 0.0
    %814 = vmatpush.msra.mxu0 0.0
    %815 = vmatpush.msra.mxu0 0.0
    %816 = vmatpush.msra.mxu0 0.0
    %817 = vmatpush.msra.mxu0 0.0
    %818 = vmatpush.msra.mxu0 0.0
    %819 = vmatpush.msra.mxu0 0.0
    %820 = vmatpush.msra.mxu0 0.0
    %821 = vmatpush.msra.mxu0 0.0
    %822 = vmatpush.msra.mxu0 0.0
    %823 = vmatpush.msra.mxu0 %v799
    %824 = vmatpush.msra.mxu0 %v798
    %825 = vmatpush.msra.mxu0 %v797
    %826 = vmatpush.msra.mxu0 %v796
    %827 = vmatmul.f32.gmra.mxu0 %v809
    %v828 = vpop.f32.mrf.mxu0
    %v829 = vadd.f32 0.0, %v828
    %830 = vdwg.mxu0
    %831 = vmatpush.msra.mxu0 0.0
    %832 = vmatpush.msra.mxu0 0.0
    %833 = vmatpush.msra.mxu0 0.0
    %834 = vmatpush.msra.mxu0 0.0
    %835 = vmatpush.msra.mxu0 0.0
    %836 = vmatpush.msra.mxu0 0.0
    %837 = vmatpush.msra.mxu0 0.0
    %838 = vmatpush.msra.mxu0 0.0
    %839 = vmatpush.msra.mxu0 0.0
    %840 = vmatpush.msra.mxu0 0.0
    %841 = vmatpush.msra.mxu0 0.0
    %842 = vmatpush.msra.mxu0 0.0
    %843 = vmatpush.msra.mxu0 %v795
    %844 = vmatpush.msra.mxu0 %v794
    %845 = vmatpush.msra.mxu0 %v793
    %846 = vmatpush.msra.mxu0 %v792
    %847 = vmatmul.f32.gmra.mxu0 %v172
    %v848 = vpop.f32.mrf.mxu0
    %v849 = vadd.f32 %v829, %v848
    %850 = vdwg.mxu0
    %v852 = vperm.slane %v800, 0
    %v854 = vadd.f32 %v849, %v852
    %v855 = vxor.u32 %v854, 2147483648
    %v856 = vmul.f32 %v855, 1.442695
    %v857 = vpow.pop %v856
    %v858 = vadd.f32 %v857, 1.0
    %v859 = vrcp.pop %v858
    %v860 = vmul.f32 %v858, %v859
    %v861 = vsub.f32 1.0, %v860
    %v862 = vmul.f32 %v859, %v861
    %v863 = vadd.f32 %v859, %v862
    %vm864 = vweird.f32 %v858
    %vm865 = vweird.f32 %v859
    %vm866 = vmor %vm864, %vm865
    %v867 = vsel %vm866, %v859, %v863
    %v868 = vand.u32 2147483647, %v858
    %vm869 = vcmp.eq.f32.partialorder %v868, 8.507059e+37
    %v870 = vand.u32 %v858, 2147483648
    %v871 = vor.u32 1.1754944e-38, %v870
    %v872 = vsel %vm869, %v871, %v867
    %v873 = vmul.f32 1.0, %v872
    %v874 = vtanh.pop %v854
    %v877 = vrot.slane %v804, 7
    %v878 = vsel %vm69, %v877, %v803
    %879 = vrot.lane.b32.xlu0 %v878, 32
    %v880 = vpop.permute.xlu0 %879
    %v882 = vmul.f32 %v873, %v880
    %884 = vrot.lane.b32.xlu0 %v874, 64
    %v885 = vpop.permute.xlu0 %884
    %v887 = vmul.f32 %v873, %v885
    %889 = vrot.lane.b32.xlu0 %v887, 32
    %v890 = vpop.permute.xlu0 %889
    %v892 = vadd.f32 %v882, %v890
    %v893 = vtanh.pop %v892
    %895 = vrot.lane.b32.xlu0 %v893, 64
    %v896 = vpop.permute.xlu0 %895
    %v898 = vmul.f32 %v873, %v896
    %900 = vrot.lane.b32.xlu0 %v898, 32
    %v901 = vpop.permute.xlu0 %900
    %v902 = vsel %vm71, %v901, 0
    %904 = vmatpush.msra.mxu0 0.0
    %905 = vmatpush.msra.mxu0 0.0
    %906 = vmatpush.msra.mxu0 0.0
    %907 = vmatpush.msra.mxu0 0.0
    %908 = vmatpush.msra.mxu0 0.0
    %909 = vmatpush.msra.mxu0 0.0
    %910 = vmatpush.msra.mxu0 0.0
    %911 = vmatpush.msra.mxu0 0.0
    %912 = vmatpush.msra.mxu0 0.0
    %913 = vmatpush.msra.mxu0 0.0
    %914 = vmatpush.msra.mxu0 0.0
    %915 = vmatpush.msra.mxu0 0.0
    %916 = vmatpush.msra.mxu0 %v799
    %917 = vmatpush.msra.mxu0 %v798
    %918 = vmatpush.msra.mxu0 %v797
    %919 = vmatpush.msra.mxu0 %v796
    %920 = vmatmul.f32.gmra.mxu0 %v902
    %v921 = vpop.f32.mrf.mxu0
    %v922 = vadd.f32 0.0, %v921
    %923 = vdwg.mxu0
    %924 = vmatpush.msra.mxu0 0.0
    %925 = vmatpush.msra.mxu0 0.0
    %926 = vmatpush.msra.mxu0 0.0
    %927 = vmatpush.msra.mxu0 0.0
    %928 = vmatpush.msra.mxu0 0.0
    %929 = vmatpush.msra.mxu0 0.0
    %930 = vmatpush.msra.mxu0 0.0
    %931 = vmatpush.msra.mxu0 0.0
    %932 = vmatpush.msra.mxu0 0.0
    %933 = vmatpush.msra.mxu0 0.0
    %934 = vmatpush.msra.mxu0 0.0
    %935 = vmatpush.msra.mxu0 0.0
    %936 = vmatpush.msra.mxu0 %v795
    %937 = vmatpush.msra.mxu0 %v794
    %938 = vmatpush.msra.mxu0 %v793
    %939 = vmatpush.msra.mxu0 %v792
    %940 = vmatmul.f32.gmra.mxu0 %v261
    %v941 = vpop.f32.mrf.mxu0
    %v942 = vadd.f32 %v922, %v941
    %943 = vdwg.mxu0
    %v944 = vadd.f32 %v942, %v852
    %v945 = vxor.u32 %v944, 2147483648
    %v946 = vmul.f32 %v945, 1.442695
    %v947 = vpow.pop %v946
    %v948 = vadd.f32 %v947, 1.0
    %v949 = vrcp.pop %v948
    %v950 = vmul.f32 %v948, %v949
    %v951 = vsub.f32 1.0, %v950
    %v952 = vmul.f32 %v949, %v951
    %v953 = vadd.f32 %v949, %v952
    %vm954 = vweird.f32 %v948
    %vm955 = vweird.f32 %v949
    %vm956 = vmor %vm954, %vm955
    %v957 = vsel %vm956, %v949, %v953
    %v958 = vand.u32 2147483647, %v948
    %vm959 = vcmp.eq.f32.partialorder %v958, 8.507059e+37
    %v960 = vand.u32 %v948, 2147483648
    %v961 = vor.u32 1.1754944e-38, %v960
    %v962 = vsel %vm959, %v961, %v957
    %v963 = vmul.f32 1.0, %v962
    %v964 = vtanh.pop %v944
    %v965 = vmul.f32 %v963, %v892
    %967 = vrot.lane.b32.xlu0 %v964, 64
    %v968 = vpop.permute.xlu0 %967
    %v970 = vmul.f32 %v963, %v968
    %972 = vrot.lane.b32.xlu0 %v970, 32
    %v973 = vpop.permute.xlu0 %972
    %v975 = vadd.f32 %v965, %v973
    %v976 = vtanh.pop %v975
    %978 = vrot.lane.b32.xlu0 %v976, 64
    %v979 = vpop.permute.xlu0 %978
    %v981 = vmul.f32 %v963, %v979
    %983 = vrot.lane.b32.xlu0 %v981, 32
    %v984 = vpop.permute.xlu0 %983
    %v985 = vsel %vm71, %v984, 0
    %987 = vmatpush.msra.mxu0 0.0
    %988 = vmatpush.msra.mxu0 0.0
    %989 = vmatpush.msra.mxu0 0.0
    %990 = vmatpush.msra.mxu0 0.0
    %991 = vmatpush.msra.mxu0 0.0
    %992 = vmatpush.msra.mxu0 0.0
    %993 = vmatpush.msra.mxu0 0.0
    %994 = vmatpush.msra.mxu0 0.0
    %995 = vmatpush.msra.mxu0 0.0
    %996 = vmatpush.msra.mxu0 0.0
    %997 = vmatpush.msra.mxu0 0.0
    %998 = vmatpush.msra.mxu0 0.0
    %999 = vmatpush.msra.mxu0 %v799
    %1000 = vmatpush.msra.mxu0 %v798
    %1001 = vmatpush.msra.mxu0 %v797
    %1002 = vmatpush.msra.mxu0 %v796
    %1003 = vmatmul.f32.gmra.mxu0 %v985
    %v1004 = vpop.f32.mrf.mxu0
    %v1005 = vadd.f32 0.0, %v1004
    %1006 = vdwg.mxu0
    %1007 = vmatpush.msra.mxu0 0.0
    %1008 = vmatpush.msra.mxu0 0.0
    %1009 = vmatpush.msra.mxu0 0.0
    %1010 = vmatpush.msra.mxu0 0.0
    %1011 = vmatpush.msra.mxu0 0.0
    %1012 = vmatpush.msra.mxu0 0.0
    %1013 = vmatpush.msra.mxu0 0.0
    %1014 = vmatpush.msra.mxu0 0.0
    %1015 = vmatpush.msra.mxu0 0.0
    %1016 = vmatpush.msra.mxu0 0.0
    %1017 = vmatpush.msra.mxu0 0.0
    %1018 = vmatpush.msra.mxu0 0.0
    %1019 = vmatpush.msra.mxu0 %v795
    %1020 = vmatpush.msra.mxu0 %v794
    %1021 = vmatpush.msra.mxu0 %v793
    %1022 = vmatpush.msra.mxu0 %v792
    %1023 = vmatmul.f32.gmra.mxu0 %v350
    %v1024 = vpop.f32.mrf.mxu0
    %v1025 = vadd.f32 %v1005, %v1024
    %1026 = vdwg.mxu0
    %v1027 = vadd.f32 %v1025, %v852
    %v1028 = vxor.u32 %v1027, 2147483648
    %v1029 = vmul.f32 %v1028, 1.442695
    %v1030 = vpow.pop %v1029
    %v1031 = vadd.f32 %v1030, 1.0
    %v1032 = vrcp.pop %v1031
    %v1033 = vmul.f32 %v1031, %v1032
    %v1034 = vsub.f32 1.0, %v1033
    %v1035 = vmul.f32 %v1032, %v1034
    %v1036 = vadd.f32 %v1032, %v1035
    %vm1037 = vweird.f32 %v1031
    %vm1038 = vweird.f32 %v1032
    %vm1039 = vmor %vm1037, %vm1038
    %v1040 = vsel %vm1039, %v1032, %v1036
    %v1041 = vand.u32 2147483647, %v1031
    %vm1042 = vcmp.eq.f32.partialorder %v1041, 8.507059e+37
    %v1043 = vand.u32 %v1031, 2147483648
    %v1044 = vor.u32 1.1754944e-38, %v1043
    %v1045 = vsel %vm1042, %v1044, %v1040
    %v1046 = vmul.f32 1.0, %v1045
    %v1047 = vtanh.pop %v1027
    %v1048 = vmul.f32 %v1046, %v975
    %1050 = vrot.lane.b32.xlu0 %v1047, 64
    %v1051 = vpop.permute.xlu0 %1050
    %v1053 = vmul.f32 %v1046, %v1051
    %1055 = vrot.lane.b32.xlu0 %v1053, 32
    %v1056 = vpop.permute.xlu0 %1055
    %v1058 = vadd.f32 %v1048, %v1056
    %v1059 = vtanh.pop %v1058
    %1061 = vrot.lane.b32.xlu0 %v1059, 64
    %v1062 = vpop.permute.xlu0 %1061
    %v1064 = vmul.f32 %v1046, %v1062
    %1066 = vrot.lane.b32.xlu0 %v1064, 32
    %v1067 = vpop.permute.xlu0 %1066
    %v1068 = vsel %vm71, %v1067, 0
    %1070 = vmatpush.msra.mxu0 0.0
    %1071 = vmatpush.msra.mxu0 0.0
    %1072 = vmatpush.msra.mxu0 0.0
    %1073 = vmatpush.msra.mxu0 0.0
    %1074 = vmatpush.msra.mxu0 0.0
    %1075 = vmatpush.msra.mxu0 0.0
    %1076 = vmatpush.msra.mxu0 0.0
    %1077 = vmatpush.msra.mxu0 0.0
    %1078 = vmatpush.msra.mxu0 0.0
    %1079 = vmatpush.msra.mxu0 0.0
    %1080 = vmatpush.msra.mxu0 0.0
    %1081 = vmatpush.msra.mxu0 0.0
    %1082 = vmatpush.msra.mxu0 %v799
    %1083 = vmatpush.msra.mxu0 %v798
    %1084 = vmatpush.msra.mxu0 %v797
    %1085 = vmatpush.msra.mxu0 %v796
    %1086 = vmatmul.f32.gmra.mxu0 %v1068
    %v1087 = vpop.f32.mrf.mxu0
    %v1088 = vadd.f32 0.0, %v1087
    %1089 = vdwg.mxu0
    %1090 = vmatpush.msra.mxu0 0.0
    %1091 = vmatpush.msra.mxu0 0.0
    %1092 = vmatpush.msra.mxu0 0.0
    %1093 = vmatpush.msra.mxu0 0.0
    %1094 = vmatpush.msra.mxu0 0.0
    %1095 = vmatpush.msra.mxu0 0.0
    %1096 = vmatpush.msra.mxu0 0.0
    %1097 = vmatpush.msra.mxu0 0.0
    %1098 = vmatpush.msra.mxu0 0.0
    %1099 = vmatpush.msra.mxu0 0.0
    %1100 = vmatpush.msra.mxu0 0.0
    %1101 = vmatpush.msra.mxu0 0.0
    %1102 = vmatpush.msra.mxu0 %v795
    %1103 = vmatpush.msra.mxu0 %v794
    %1104 = vmatpush.msra.mxu0 %v793
    %1105 = vmatpush.msra.mxu0 %v792
    %1106 = vmatmul.f32.gmra.mxu0 %v439
    %v1107 = vpop.f32.mrf.mxu0
    %v1108 = vadd.f32 %v1088, %v1107
    %1109 = vdwg.mxu0
    %v1110 = vadd.f32 %v1108, %v852
    %v1111 = vxor.u32 %v1110, 2147483648
    %v1112 = vmul.f32 %v1111, 1.442695
    %v1113 = vpow.pop %v1112
    %v1114 = vadd.f32 %v1113, 1.0
    %v1115 = vrcp.pop %v1114
    %v1116 = vmul.f32 %v1114, %v1115
    %v1117 = vsub.f32 1.0, %v1116
    %v1118 = vmul.f32 %v1115, %v1117
    %v1119 = vadd.f32 %v1115, %v1118
    %vm1120 = vweird.f32 %v1114
    %vm1121 = vweird.f32 %v1115
    %vm1122 = vmor %vm1120, %vm1121
    %v1123 = vsel %vm1122, %v1115, %v1119
    %v1124 = vand.u32 2147483647, %v1114
    %vm1125 = vcmp.eq.f32.partialorder %v1124, 8.507059e+37
    %v1126 = vand.u32 %v1114, 2147483648
    %v1127 = vor.u32 1.1754944e-38, %v1126
    %v1128 = vsel %vm1125, %v1127, %v1123
    %v1129 = vmul.f32 1.0, %v1128
    %v1130 = vtanh.pop %v1110
    %v1131 = vmul.f32 %v1129, %v1058
    %1133 = vrot.lane.b32.xlu0 %v1130, 64
    %v1134 = vpop.permute.xlu0 %1133
    %v1136 = vmul.f32 %v1129, %v1134
    %1138 = vrot.lane.b32.xlu0 %v1136, 32
    %v1139 = vpop.permute.xlu0 %1138
    %v1141 = vadd.f32 %v1131, %v1139
    %v1142 = vtanh.pop %v1141
    %1144 = vrot.lane.b32.xlu0 %v1142, 64
    %v1145 = vpop.permute.xlu0 %1144
    %v1147 = vmul.f32 %v1129, %v1145
    %1149 = vrot.lane.b32.xlu0 %v1147, 32
    %v1150 = vpop.permute.xlu0 %1149
    %v1151 = vsel %vm71, %v1150, 0
    %1153 = vmatpush.msra.mxu0 0.0
    %1154 = vmatpush.msra.mxu0 0.0
    %1155 = vmatpush.msra.mxu0 0.0
    %1156 = vmatpush.msra.mxu0 0.0
    %1157 = vmatpush.msra.mxu0 0.0
    %1158 = vmatpush.msra.mxu0 0.0
    %1159 = vmatpush.msra.mxu0 0.0
    %1160 = vmatpush.msra.mxu0 0.0
    %1161 = vmatpush.msra.mxu0 0.0
    %1162 = vmatpush.msra.mxu0 0.0
    %1163 = vmatpush.msra.mxu0 0.0
    %1164 = vmatpush.msra.mxu0 0.0
    %1165 = vmatpush.msra.mxu0 %v799
    %1166 = vmatpush.msra.mxu0 %v798
    %1167 = vmatpush.msra.mxu0 %v797
    %1168 = vmatpush.msra.mxu0 %v796
    %1169 = vmatmul.f32.gmra.mxu0 %v1151
    %v1170 = vpop.f32.mrf.mxu0
    %v1171 = vadd.f32 0.0, %v1170
    %1172 = vdwg.mxu0
    %1173 = vmatpush.msra.mxu0 0.0
    %1174 = vmatpush.msra.mxu0 0.0
    %1175 = vmatpush.msra.mxu0 0.0
    %1176 = vmatpush.msra.mxu0 0.0
    %1177 = vmatpush.msra.mxu0 0.0
    %1178 = vmatpush.msra.mxu0 0.0
    %1179 = vmatpush.msra.mxu0 0.0
    %1180 = vmatpush.msra.mxu0 0.0
    %1181 = vmatpush.msra.mxu0 0.0
    %1182 = vmatpush.msra.mxu0 0.0
    %1183 = vmatpush.msra.mxu0 0.0
    %1184 = vmatpush.msra.mxu0 0.0
    %1185 = vmatpush.msra.mxu0 %v795
    %1186 = vmatpush.msra.mxu0 %v794
    %1187 = vmatpush.msra.mxu0 %v793
    %1188 = vmatpush.msra.mxu0 %v792
    %1189 = vmatmul.f32.gmra.mxu0 %v528
    %v1190 = vpop.f32.mrf.mxu0
    %v1191 = vadd.f32 %v1171, %v1190
    %1192 = vdwg.mxu0
    %v1193 = vadd.f32 %v1191, %v852
    %v1194 = vxor.u32 %v1193, 2147483648
    %v1195 = vmul.f32 %v1194, 1.442695
    %v1196 = vpow.pop %v1195
    %v1197 = vadd.f32 %v1196, 1.0
    %v1198 = vrcp.pop %v1197
    %v1199 = vmul.f32 %v1197, %v1198
    %v1200 = vsub.f32 1.0, %v1199
    %v1201 = vmul.f32 %v1198, %v1200
    %v1202 = vadd.f32 %v1198, %v1201
    %vm1203 = vweird.f32 %v1197
    %vm1204 = vweird.f32 %v1198
    %vm1205 = vmor %vm1203, %vm1204
    %v1206 = vsel %vm1205, %v1198, %v1202
    %v1207 = vand.u32 2147483647, %v1197
    %vm1208 = vcmp.eq.f32.partialorder %v1207, 8.507059e+37
    %v1209 = vand.u32 %v1197, 2147483648
    %v1210 = vor.u32 1.1754944e-38, %v1209
    %v1211 = vsel %vm1208, %v1210, %v1206
    %v1212 = vmul.f32 1.0, %v1211
    %v1213 = vtanh.pop %v1193
    %v1214 = vmul.f32 %v1212, %v1141
    %1216 = vrot.lane.b32.xlu0 %v1213, 64
    %v1217 = vpop.permute.xlu0 %1216
    %v1219 = vmul.f32 %v1212, %v1217
    %1221 = vrot.lane.b32.xlu0 %v1219, 32
    %v1222 = vpop.permute.xlu0 %1221
    %v1224 = vadd.f32 %v1214, %v1222
    %v1225 = vtanh.pop %v1224
    %1227 = vrot.lane.b32.xlu0 %v1225, 64
    %v1228 = vpop.permute.xlu0 %1227
    %v1230 = vmul.f32 %v1212, %v1228
    %1232 = vrot.lane.b32.xlu0 %v1230, 32
    %v1233 = vpop.permute.xlu0 %1232
    %v1234 = vsel %vm71, %v1233, 0
    %1236 = vmatpush.msra.mxu0 0.0
    %1237 = vmatpush.msra.mxu0 0.0
    %1238 = vmatpush.msra.mxu0 0.0
    %1239 = vmatpush.msra.mxu0 0.0
    %1240 = vmatpush.msra.mxu0 0.0
    %1241 = vmatpush.msra.mxu0 0.0
    %1242 = vmatpush.msra.mxu0 0.0
    %1243 = vmatpush.msra.mxu0 0.0
    %1244 = vmatpush.msra.mxu0 0.0
    %1245 = vmatpush.msra.mxu0 0.0
    %1246 = vmatpush.msra.mxu0 0.0
    %1247 = vmatpush.msra.mxu0 0.0
    %1248 = vmatpush.msra.mxu0 %v799
    %1249 = vmatpush.msra.mxu0 %v798
    %1250 = vmatpush.msra.mxu0 %v797
    %1251 = vmatpush.msra.mxu0 %v796
    %1252 = vmatmul.f32.gmra.mxu0 %v1234
    %v1253 = vpop.f32.mrf.mxu0
    %v1254 = vadd.f32 0.0, %v1253
    %1255 = vdwg.mxu0
    %1256 = vmatpush.msra.mxu0 0.0
    %1257 = vmatpush.msra.mxu0 0.0
    %1258 = vmatpush.msra.mxu0 0.0
    %1259 = vmatpush.msra.mxu0 0.0
    %1260 = vmatpush.msra.mxu0 0.0
    %1261 = vmatpush.msra.mxu0 0.0
    %1262 = vmatpush.msra.mxu0 0.0
    %1263 = vmatpush.msra.mxu0 0.0
    %1264 = vmatpush.msra.mxu0 0.0
    %1265 = vmatpush.msra.mxu0 0.0
    %1266 = vmatpush.msra.mxu0 0.0
    %1267 = vmatpush.msra.mxu0 0.0
    %1268 = vmatpush.msra.mxu0 %v795
    %1269 = vmatpush.msra.mxu0 %v794
    %1270 = vmatpush.msra.mxu0 %v793
    %1271 = vmatpush.msra.mxu0 %v792
    %1272 = vmatmul.f32.gmra.mxu0 %v617
    %v1273 = vpop.f32.mrf.mxu0
    %v1274 = vadd.f32 %v1254, %v1273
    %1275 = vdwg.mxu0
    %v1276 = vadd.f32 %v1274, %v852
    %v1277 = vxor.u32 %v1276, 2147483648
    %v1278 = vmul.f32 %v1277, 1.442695
    %v1279 = vpow.pop %v1278
    %v1280 = vadd.f32 %v1279, 1.0
    %v1281 = vrcp.pop %v1280
    %v1282 = vmul.f32 %v1280, %v1281
    %v1283 = vsub.f32 1.0, %v1282
    %v1284 = vmul.f32 %v1281, %v1283
    %v1285 = vadd.f32 %v1281, %v1284
    %vm1286 = vweird.f32 %v1280
    %vm1287 = vweird.f32 %v1281
    %vm1288 = vmor %vm1286, %vm1287
    %v1289 = vsel %vm1288, %v1281, %v1285
    %v1290 = vand.u32 2147483647, %v1280
    %vm1291 = vcmp.eq.f32.partialorder %v1290, 8.507059e+37
    %v1292 = vand.u32 %v1280, 2147483648
    %v1293 = vor.u32 1.1754944e-38, %v1292
    %v1294 = vsel %vm1291, %v1293, %v1289
    %v1295 = vmul.f32 1.0, %v1294
    %v1296 = vtanh.pop %v1276
    %v1297 = vmul.f32 %v1295, %v1224
    %1299 = vrot.lane.b32.xlu0 %v1296, 64
    %v1300 = vpop.permute.xlu0 %1299
    %v1302 = vmul.f32 %v1295, %v1300
    %1304 = vrot.lane.b32.xlu0 %v1302, 32
    %v1305 = vpop.permute.xlu0 %1304
    %v1307 = vadd.f32 %v1297, %v1305
    %v1308 = vtanh.pop %v1307
    %1310 = vrot.lane.b32.xlu0 %v1308, 64
    %v1311 = vpop.permute.xlu0 %1310
    %v1313 = vmul.f32 %v1295, %v1311
    %1315 = vrot.lane.b32.xlu0 %v1313, 32
    %v1316 = vpop.permute.xlu0 %1315
    %v1317 = vsel %vm71, %v1316, 0
    %1319 = vmatpush.msra.mxu0 0.0
    %1320 = vmatpush.msra.mxu0 0.0
    %1321 = vmatpush.msra.mxu0 0.0
    %1322 = vmatpush.msra.mxu0 0.0
    %1323 = vmatpush.msra.mxu0 0.0
    %1324 = vmatpush.msra.mxu0 0.0
    %1325 = vmatpush.msra.mxu0 0.0
    %1326 = vmatpush.msra.mxu0 0.0
    %1327 = vmatpush.msra.mxu0 0.0
    %1328 = vmatpush.msra.mxu0 0.0
    %1329 = vmatpush.msra.mxu0 0.0
    %1330 = vmatpush.msra.mxu0 0.0
    %1331 = vmatpush.msra.mxu0 %v799
    %1332 = vmatpush.msra.mxu0 %v798
    %1333 = vmatpush.msra.mxu0 %v797
    %1334 = vmatpush.msra.mxu0 %v796
    %1335 = vmatmul.f32.gmra.mxu0 %v1317
    %v1336 = vpop.f32.mrf.mxu0
    %v1337 = vadd.f32 0.0, %v1336
    %1338 = vdwg.mxu0
    %1339 = vmatpush.msra.mxu0 0.0
    %1340 = vmatpush.msra.mxu0 0.0
    %1341 = vmatpush.msra.mxu0 0.0
    %1342 = vmatpush.msra.mxu0 0.0
    %1343 = vmatpush.msra.mxu0 0.0
    %1344 = vmatpush.msra.mxu0 0.0
    %1345 = vmatpush.msra.mxu0 0.0
    %1346 = vmatpush.msra.mxu0 0.0
    %1347 = vmatpush.msra.mxu0 0.0
    %1348 = vmatpush.msra.mxu0 0.0
    %1349 = vmatpush.msra.mxu0 0.0
    %1350 = vmatpush.msra.mxu0 0.0
    %1351 = vmatpush.msra.mxu0 %v795
    %1352 = vmatpush.msra.mxu0 %v794
    %1353 = vmatpush.msra.mxu0 %v793
    %1354 = vmatpush.msra.mxu0 %v792
    %1355 = vmatmul.f32.gmra.mxu0 %v706
    %v1356 = vpop.f32.mrf.mxu0
    %v1357 = vadd.f32 %v1337, %v1356
    %1358 = vdwg.mxu0
    %v1359 = vadd.f32 %v1357, %v852
    %v1360 = vxor.u32 %v1359, 2147483648
    %v1361 = vmul.f32 %v1360, 1.442695
    %v1362 = vpow.pop %v1361
    %v1363 = vadd.f32 %v1362, 1.0
    %v1364 = vrcp.pop %v1363
    %v1365 = vmul.f32 %v1363, %v1364
    %v1366 = vsub.f32 1.0, %v1365
    %v1367 = vmul.f32 %v1364, %v1366
    %v1368 = vadd.f32 %v1364, %v1367
    %vm1369 = vweird.f32 %v1363
    %vm1370 = vweird.f32 %v1364
    %vm1371 = vmor %vm1369, %vm1370
    %v1372 = vsel %vm1371, %v1364, %v1368
    %v1373 = vand.u32 2147483647, %v1363
    %vm1374 = vcmp.eq.f32.partialorder %v1373, 8.507059e+37
    %v1375 = vand.u32 %v1363, 2147483648
    %v1376 = vor.u32 1.1754944e-38, %v1375
    %v1377 = vsel %vm1374, %v1376, %v1372
    %v1378 = vmul.f32 1.0, %v1377
    %v1379 = vtanh.pop %v1359
    %v1380 = vmul.f32 %v1378, %v1307
    %1382 = vrot.lane.b32.xlu0 %v1379, 64
    %v1383 = vpop.permute.xlu0 %1382
    %v1385 = vmul.f32 %v1378, %v1383
    %1387 = vrot.lane.b32.xlu0 %v1385, 32
    %v1388 = vpop.permute.xlu0 %1387
    %v1390 = vadd.f32 %v1380, %v1388
    %v1391 = vtanh.pop %v1390
    %1393 = vrot.lane.b32.xlu0 %v1391, 64
    %v1394 = vpop.permute.xlu0 %1393
    %v1396 = vmul.f32 %v1378, %v1394
    %1398 = vrot.lane.b32.xlu0 %v1396, 32
    %v1399 = vpop.permute.xlu0 %1398
    %v1400 = vsel %vm71, %v1399, 0
    %1402 = vmatpush.msra.mxu0 0.0
    %1403 = vmatpush.msra.mxu0 0.0
    %1404 = vmatpush.msra.mxu0 0.0
    %1405 = vmatpush.msra.mxu0 0.0
    %1406 = vmatpush.msra.mxu0 0.0
    %1407 = vmatpush.msra.mxu0 0.0
    %1408 = vmatpush.msra.mxu0 0.0
    %1409 = vmatpush.msra.mxu0 0.0
    %1410 = vmatpush.msra.mxu0 0.0
    %1411 = vmatpush.msra.mxu0 0.0
    %1412 = vmatpush.msra.mxu0 0.0
    %1413 = vmatpush.msra.mxu0 0.0
    %1414 = vmatpush.msra.mxu0 %v799
    %1415 = vmatpush.msra.mxu0 %v798
    %1416 = vmatpush.msra.mxu0 %v797
    %1417 = vmatpush.msra.mxu0 %v796
    %1418 = vmatmul.f32.gmra.mxu0 %v1400
    %v1419 = vpop.f32.mrf.mxu0
    %v1420 = vadd.f32 0.0, %v1419
    %1421 = vdwg.mxu0
    %1423 = vrot.lane.b32.xlu0 %v791, 32
    %v1424 = vpop.permute.xlu0 %1423
    %v1425 = vsel %vm71, %v1424, 0
    %1427 = vmatpush.msra.mxu0 0.0
    %1428 = vmatpush.msra.mxu0 0.0
    %1429 = vmatpush.msra.mxu0 0.0
    %1430 = vmatpush.msra.mxu0 0.0
    %1431 = vmatpush.msra.mxu0 0.0
    %1432 = vmatpush.msra.mxu0 0.0
    %1433 = vmatpush.msra.mxu0 0.0
    %1434 = vmatpush.msra.mxu0 0.0
    %1435 = vmatpush.msra.mxu0 0.0
    %1436 = vmatpush.msra.mxu0 0.0
    %1437 = vmatpush.msra.mxu0 0.0
    %1438 = vmatpush.msra.mxu0 0.0
    %1439 = vmatpush.msra.mxu0 %v795
    %1440 = vmatpush.msra.mxu0 %v794
    %1441 = vmatpush.msra.mxu0 %v793
    %1442 = vmatpush.msra.mxu0 %v792
    %1443 = vmatmul.f32.gmra.mxu0 %v1425
    %v1444 = vpop.f32.mrf.mxu0
    %v1445 = vadd.f32 %v1420, %v1444
    %1446 = vdwg.mxu0
    %v1447 = vadd.f32 %v1445, %v852
    %v1448 = vxor.u32 %v1447, 2147483648
    %v1449 = vmul.f32 %v1448, 1.442695
    %v1450 = vpow.pop %v1449
    %v1451 = vadd.f32 %v1450, 1.0
    %v1452 = vrcp.pop %v1451
    %v1453 = vmul.f32 %v1451, %v1452
    %v1454 = vsub.f32 1.0, %v1453
    %v1455 = vmul.f32 %v1452, %v1454
    %v1456 = vadd.f32 %v1452, %v1455
    %vm1457 = vweird.f32 %v1451
    %vm1458 = vweird.f32 %v1452
    %vm1459 = vmor %vm1457, %vm1458
    %v1460 = vsel %vm1459, %v1452, %v1456
    %v1461 = vand.u32 2147483647, %v1451
    %vm1462 = vcmp.eq.f32.partialorder %v1461, 8.507059e+37
    %v1463 = vand.u32 %v1451, 2147483648
    %v1464 = vor.u32 1.1754944e-38, %v1463
    %v1465 = vsel %vm1462, %v1464, %v1460
    %v1466 = vmul.f32 1.0, %v1465
    %v1467 = vtanh.pop %v1447
    %v1468 = vmul.f32 %v1466, %v1390
    %1470 = vrot.lane.b32.xlu0 %v1467, 64
    %v1471 = vpop.permute.xlu0 %1470
    %v1473 = vmul.f32 %v1466, %v1471
    %1475 = vrot.lane.b32.xlu0 %v1473, 32
    %v1476 = vpop.permute.xlu0 %1475
    %v1478 = vadd.f32 %v1468, %v1476
    %v1479 = vtanh.pop %v1478
    %1481 = vrot.lane.b32.xlu0 %v1479, 64
    %v1482 = vpop.permute.xlu0 %1481
    %v1484 = vmul.f32 %v1466, %v1482
    %v1485 = vld [vmem:[%s9] sm:$0xff]
    %v1486 = vld [vmem:[%s9 + $0x8] sm:$0xff]
    %v1487 = vld [vmem:[%s9 + $0x10] sm:$0xff]
    %v1488 = vld [vmem:[%s9 + $0x18] sm:$0xff]
    %v1489 = vld [vmem:[%s10] sm:$0x1]
    %v1491 = vperm.slane %v1489, 0
    %1493 = vmatpush.msra.mxu0 0.0
    %1494 = vmatpush.msra.mxu0 0.0
    %1495 = vmatpush.msra.mxu0 0.0
    %1496 = vmatpush.msra.mxu0 0.0
    %1497 = vmatpush.msra.mxu0 0.0
    %1498 = vmatpush.msra.mxu0 0.0
    %1499 = vmatpush.msra.mxu0 0.0
    %1500 = vmatpush.msra.mxu0 0.0
    %1501 = vmatpush.msra.mxu0 0.0
    %1502 = vmatpush.msra.mxu0 0.0
    %1503 = vmatpush.msra.mxu0 0.0
    %1504 = vmatpush.msra.mxu0 0.0
    %1505 = vmatpush.msra.mxu0 %v1488
    %1506 = vmatpush.msra.mxu0 %v1487
    %1507 = vmatpush.msra.mxu0 %v1486
    %1508 = vmatpush.msra.mxu0 %v1485
    %1509 = vmatmul.f32.gmra.mxu0 %v902
    %v1510 = vpop.f32.mrf.mxu0
    %v1511 = vadd.f32 %v1491, %v1510
    %1512 = vdwg.mxu0
    %vm1513 = vcmask 1041408
    %v1514 = vsel %vm1513, %v1511, -inf
    %1515 = vmax.xlane.f32.xlu0 %v1514
    %v1516 = vpop.xlane.xlu0 %1515
    %v1517 = vsub.f32 %v1511, %v1516
    %v1518 = vmul.f32 %v1517, 1.442695
    %v1519 = vpow.pop %v1518
    %v1520 = vsel %vm1513, %v1519, 0.0
    %1521 = vadd.xlane.f32.xlu0 %v1520
    %v1522 = vpop.xlane.xlu0 %1521
    %v1523 = vlog2.pop %v1522
    %v1524 = vmul.f32 %v1523, 0.6931472
    %v1525 = vsub.f32 %v1517, %v1524
    %v1527 = vrot.slane %v1525, 1
    %1529 = vst [vmem:[#allocation2] sm:$0x1] %v1525
    %1530 = vst [vmem:[#allocation2 + $0x8] sm:$0x1] %v1527
    %1531 = vmatpush.msra.mxu0 0.0
    %1532 = vmatpush.msra.mxu0 0.0
    %1533 = vmatpush.msra.mxu0 0.0
    %1534 = vmatpush.msra.mxu0 0.0
    %1535 = vmatpush.msra.mxu0 0.0
    %1536 = vmatpush.msra.mxu0 0.0
    %1537 = vmatpush.msra.mxu0 0.0
    %1538 = vmatpush.msra.mxu0 0.0
    %1539 = vmatpush.msra.mxu0 0.0
    %1540 = vmatpush.msra.mxu0 0.0
    %1541 = vmatpush.msra.mxu0 0.0
    %1542 = vmatpush.msra.mxu0 0.0
    %1543 = vmatpush.msra.mxu0 %v1488
    %1544 = vmatpush.msra.mxu0 %v1487
    %1545 = vmatpush.msra.mxu0 %v1486
    %1546 = vmatpush.msra.mxu0 %v1485
    %1547 = vmatmul.f32.gmra.mxu0 %v985
    %v1548 = vpop.f32.mrf.mxu0
    %v1549 = vadd.f32 %v1491, %v1548
    %1550 = vdwg.mxu0
    %v1551 = vsel %vm1513, %v1549, -inf
    %1552 = vmax.xlane.f32.xlu0 %v1551
    %v1553 = vpop.xlane.xlu0 %1552
    %v1554 = vsub.f32 %v1549, %v1553
    %v1555 = vmul.f32 %v1554, 1.442695
    %v1556 = vpow.pop %v1555
    %v1557 = vsel %vm1513, %v1556, 0.0
    %1558 = vadd.xlane.f32.xlu0 %v1557
    %v1559 = vpop.xlane.xlu0 %1558
    %v1560 = vlog2.pop %v1559
    %v1561 = vmul.f32 %v1560, 0.6931472
    %v1562 = vsub.f32 %v1554, %v1561
    %v1564 = vrot.slane %v1562, 1
    %1566 = vst [vmem:[#allocation2 + $0x1] sm:$0x1] %v1562
    %1567 = vst [vmem:[#allocation2 + $0x9] sm:$0x1] %v1564
    %1568 = vmatpush.msra.mxu0 0.0
    %1569 = vmatpush.msra.mxu0 0.0
    %1570 = vmatpush.msra.mxu0 0.0
    %1571 = vmatpush.msra.mxu0 0.0
    %1572 = vmatpush.msra.mxu0 0.0
    %1573 = vmatpush.msra.mxu0 0.0
    %1574 = vmatpush.msra.mxu0 0.0
    %1575 = vmatpush.msra.mxu0 0.0
    %1576 = vmatpush.msra.mxu0 0.0
    %1577 = vmatpush.msra.mxu0 0.0
    %1578 = vmatpush.msra.mxu0 0.0
    %1579 = vmatpush.msra.mxu0 0.0
    %1580 = vmatpush.msra.mxu0 %v1488
    %1581 = vmatpush.msra.mxu0 %v1487
    %1582 = vmatpush.msra.mxu0 %v1486
    %1583 = vmatpush.msra.mxu0 %v1485
    %1584 = vmatmul.f32.gmra.mxu0 %v1068
    %v1585 = vpop.f32.mrf.mxu0
    %v1586 = vadd.f32 %v1491, %v1585
    %1587 = vdwg.mxu0
    %v1588 = vsel %vm1513, %v1586, -inf
    %1589 = vmax.xlane.f32.xlu0 %v1588
    %v1590 = vpop.xlane.xlu0 %1589
    %v1591 = vsub.f32 %v1586, %v1590
    %v1592 = vmul.f32 %v1591, 1.442695
    %v1593 = vpow.pop %v1592
    %v1594 = vsel %vm1513, %v1593, 0.0
    %1595 = vadd.xlane.f32.xlu0 %v1594
    %v1596 = vpop.xlane.xlu0 %1595
    %v1597 = vlog2.pop %v1596
    %v1598 = vmul.f32 %v1597, 0.6931472
    %v1599 = vsub.f32 %v1591, %v1598
    %v1601 = vrot.slane %v1599, 1
    %1603 = vst [vmem:[#allocation2 + $0x2] sm:$0x1] %v1599
    %1604 = vst [vmem:[#allocation2 + $0xa] sm:$0x1] %v1601
    %1605 = vmatpush.msra.mxu0 0.0
    %1606 = vmatpush.msra.mxu0 0.0
    %1607 = vmatpush.msra.mxu0 0.0
    %1608 = vmatpush.msra.mxu0 0.0
    %1609 = vmatpush.msra.mxu0 0.0
    %1610 = vmatpush.msra.mxu0 0.0
    %1611 = vmatpush.msra.mxu0 0.0
    %1612 = vmatpush.msra.mxu0 0.0
    %1613 = vmatpush.msra.mxu0 0.0
    %1614 = vmatpush.msra.mxu0 0.0
    %1615 = vmatpush.msra.mxu0 0.0
    %1616 = vmatpush.msra.mxu0 0.0
    %1617 = vmatpush.msra.mxu0 %v1488
    %1618 = vmatpush.msra.mxu0 %v1487
    %1619 = vmatpush.msra.mxu0 %v1486
    %1620 = vmatpush.msra.mxu0 %v1485
    %1621 = vmatmul.f32.gmra.mxu0 %v1151
    %v1622 = vpop.f32.mrf.mxu0
    %v1623 = vadd.f32 %v1491, %v1622
    %1624 = vdwg.mxu0
    %v1625 = vsel %vm1513, %v1623, -inf
    %1626 = vmax.xlane.f32.xlu0 %v1625
    %v1627 = vpop.xlane.xlu0 %1626
    %v1628 = vsub.f32 %v1623, %v1627
    %v1629 = vmul.f32 %v1628, 1.442695
    %v1630 = vpow.pop %v1629
    %v1631 = vsel %vm1513, %v1630, 0.0
    %1632 = vadd.xlane.f32.xlu0 %v1631
    %v1633 = vpop.xlane.xlu0 %1632
    %v1634 = vlog2.pop %v1633
    %v1635 = vmul.f32 %v1634, 0.6931472
    %v1636 = vsub.f32 %v1628, %v1635
    %v1638 = vrot.slane %v1636, 1
    %1640 = vst [vmem:[#allocation2 + $0x3] sm:$0x1] %v1636
    %1641 = vst [vmem:[#allocation2 + $0xb] sm:$0x1] %v1638
    %1642 = vmatpush.msra.mxu0 0.0
    %1643 = vmatpush.msra.mxu0 0.0
    %1644 = vmatpush.msra.mxu0 0.0
    %1645 = vmatpush.msra.mxu0 0.0
    %1646 = vmatpush.msra.mxu0 0.0
    %1647 = vmatpush.msra.mxu0 0.0
    %1648 = vmatpush.msra.mxu0 0.0
    %1649 = vmatpush.msra.mxu0 0.0
    %1650 = vmatpush.msra.mxu0 0.0
    %1651 = vmatpush.msra.mxu0 0.0
    %1652 = vmatpush.msra.mxu0 0.0
    %1653 = vmatpush.msra.mxu0 0.0
    %1654 = vmatpush.msra.mxu0 %v1488
    %1655 = vmatpush.msra.mxu0 %v1487
    %1656 = vmatpush.msra.mxu0 %v1486
    %1657 = vmatpush.msra.mxu0 %v1485
    %1658 = vmatmul.f32.gmra.mxu0 %v1234
    %v1659 = vpop.f32.mrf.mxu0
    %v1660 = vadd.f32 %v1491, %v1659
    %1661 = vdwg.mxu0
    %v1662 = vsel %vm1513, %v1660, -inf
    %1663 = vmax.xlane.f32.xlu0 %v1662
    %v1664 = vpop.xlane.xlu0 %1663
    %v1665 = vsub.f32 %v1660, %v1664
    %v1666 = vmul.f32 %v1665, 1.442695
    %v1667 = vpow.pop %v1666
    %v1668 = vsel %vm1513, %v1667, 0.0
    %1669 = vadd.xlane.f32.xlu0 %v1668
    %v1670 = vpop.xlane.xlu0 %1669
    %v1671 = vlog2.pop %v1670
    %v1672 = vmul.f32 %v1671, 0.6931472
    %v1673 = vsub.f32 %v1665, %v1672
    %v1675 = vrot.slane %v1673, 1
    %1677 = vst [vmem:[#allocation2 + $0x4] sm:$0x1] %v1673
    %1678 = vst [vmem:[#allocation2 + $0xc] sm:$0x1] %v1675
    %1679 = vmatpush.msra.mxu0 0.0
    %1680 = vmatpush.msra.mxu0 0.0
    %1681 = vmatpush.msra.mxu0 0.0
    %1682 = vmatpush.msra.mxu0 0.0
    %1683 = vmatpush.msra.mxu0 0.0
    %1684 = vmatpush.msra.mxu0 0.0
    %1685 = vmatpush.msra.mxu0 0.0
    %1686 = vmatpush.msra.mxu0 0.0
    %1687 = vmatpush.msra.mxu0 0.0
    %1688 = vmatpush.msra.mxu0 0.0
    %1689 = vmatpush.msra.mxu0 0.0
    %1690 = vmatpush.msra.mxu0 0.0
    %1691 = vmatpush.msra.mxu0 %v1488
    %1692 = vmatpush.msra.mxu0 %v1487
    %1693 = vmatpush.msra.mxu0 %v1486
    %1694 = vmatpush.msra.mxu0 %v1485
    %1695 = vmatmul.f32.gmra.mxu0 %v1317
    %v1696 = vpop.f32.mrf.mxu0
    %v1697 = vadd.f32 %v1491, %v1696
    %1698 = vdwg.mxu0
    %v1699 = vsel %vm1513, %v1697, -inf
    %1700 = vmax.xlane.f32.xlu0 %v1699
    %v1701 = vpop.xlane.xlu0 %1700
    %v1702 = vsub.f32 %v1697, %v1701
    %v1703 = vmul.f32 %v1702, 1.442695
    %v1704 = vpow.pop %v1703
    %v1705 = vsel %vm1513, %v1704, 0.0
    %1706 = vadd.xlane.f32.xlu0 %v1705
    %v1707 = vpop.xlane.xlu0 %1706
    %v1708 = vlog2.pop %v1707
    %v1709 = vmul.f32 %v1708, 0.6931472
    %v1710 = vsub.f32 %v1702, %v1709
    %v1712 = vrot.slane %v1710, 1
    %1714 = vst [vmem:[#allocation2 + $0x5] sm:$0x1] %v1710
    %1715 = vst [vmem:[#allocation2 + $0xd] sm:$0x1] %v1712
    %1716 = vmatpush.msra.mxu0 0.0
    %1717 = vmatpush.msra.mxu0 0.0
    %1718 = vmatpush.msra.mxu0 0.0
    %1719 = vmatpush.msra.mxu0 0.0
    %1720 = vmatpush.msra.mxu0 0.0
    %1721 = vmatpush.msra.mxu0 0.0
    %1722 = vmatpush.msra.mxu0 0.0
    %1723 = vmatpush.msra.mxu0 0.0
    %1724 = vmatpush.msra.mxu0 0.0
    %1725 = vmatpush.msra.mxu0 0.0
    %1726 = vmatpush.msra.mxu0 0.0
    %1727 = vmatpush.msra.mxu0 0.0
    %1728 = vmatpush.msra.mxu0 %v1488
    %1729 = vmatpush.msra.mxu0 %v1487
    %1730 = vmatpush.msra.mxu0 %v1486
    %1731 = vmatpush.msra.mxu0 %v1485
    %1732 = vmatmul.f32.gmra.mxu0 %v1400
    %v1733 = vpop.f32.mrf.mxu0
    %v1734 = vadd.f32 %v1491, %v1733
    %1735 = vdwg.mxu0
    %v1736 = vsel %vm1513, %v1734, -inf
    %1737 = vmax.xlane.f32.xlu0 %v1736
    %v1738 = vpop.xlane.xlu0 %1737
    %v1739 = vsub.f32 %v1734, %v1738
    %v1740 = vmul.f32 %v1739, 1.442695
    %v1741 = vpow.pop %v1740
    %v1742 = vsel %vm1513, %v1741, 0.0
    %1743 = vadd.xlane.f32.xlu0 %v1742
    %v1744 = vpop.xlane.xlu0 %1743
    %v1745 = vlog2.pop %v1744
    %v1746 = vmul.f32 %v1745, 0.6931472
    %v1747 = vsub.f32 %v1739, %v1746
    %v1749 = vrot.slane %v1747, 1
    %1751 = vst [vmem:[#allocation2 + $0x6] sm:$0x1] %v1747
    %1752 = vst [vmem:[#allocation2 + $0xe] sm:$0x1] %v1749
    %1754 = vrot.lane.b32.xlu0 %v1484, 32
    %v1755 = vpop.permute.xlu0 %1754
    %v1756 = vsel %vm71, %v1755, 0
    %1758 = vmatpush.msra.mxu0 0.0
    %1759 = vmatpush.msra.mxu0 0.0
    %1760 = vmatpush.msra.mxu0 0.0
    %1761 = vmatpush.msra.mxu0 0.0
    %1762 = vmatpush.msra.mxu0 0.0
    %1763 = vmatpush.msra.mxu0 0.0
    %1764 = vmatpush.msra.mxu0 0.0
    %1765 = vmatpush.msra.mxu0 0.0
    %1766 = vmatpush.msra.mxu0 0.0
    %1767 = vmatpush.msra.mxu0 0.0
    %1768 = vmatpush.msra.mxu0 0.0
    %1769 = vmatpush.msra.mxu0 0.0
    %1770 = vmatpush.msra.mxu0 %v1488
    %1771 = vmatpush.msra.mxu0 %v1487
    %1772 = vmatpush.msra.mxu0 %v1486
    %1773 = vmatpush.msra.mxu0 %v1485
    %1774 = vmatmul.f32.gmra.mxu0 %v1756
    %v1775 = vpop.f32.mrf.mxu0
    %v1776 = vadd.f32 %v1491, %v1775
    %1777 = vdwg.mxu0
    %v1778 = vsel %vm1513, %v1776, -inf
    %1779 = vmax.xlane.f32.xlu0 %v1778
    %v1780 = vpop.xlane.xlu0 %1779
    %v1781 = vsub.f32 %v1776, %v1780
    %v1782 = vmul.f32 %v1781, 1.442695
    %v1783 = vpow.pop %v1782
    %v1784 = vsel %vm1513, %v1783, 0.0
    %1785 = vadd.xlane.f32.xlu0 %v1784
    %v1786 = vpop.xlane.xlu0 %1785
    %v1787 = vlog2.pop %v1786
    %v1788 = vmul.f32 %v1787, 0.6931472
    %v1789 = vsub.f32 %v1781, %v1788
    %v1791 = vrot.slane %v1789, 1
    %1793 = vst [vmem:[#allocation2 + $0x7] sm:$0x1] %v1789
    %1794 = vst [vmem:[#allocation2 + $0xf] sm:$0x1] %v1791
    // Predicated region
    $region46: #{seq_model_forward.1} parent=1 // pred_check
      _
    $region47: #{seq_model_forward.1} parent=1 // pred_check_branch
      %1796 = sbr.rel (0) target = $region49
    $region48: #{seq_model_forward.1} parent=1 // pred_region
      %1798 = vsyncadd [#allocation3], 0
      %s1799 = sshll.u32 [#allocation2], 4
      %s1800 = int_to_ptr.vmem [resolvable:$true] %s1799
      %s1801 = sshll.u32 %s11, 4
      %s1802 = int_to_ptr.hbm [resolvable:$true] %s1801
      %1807 = dma.vmem_to_hbm [thread:$0]  %s1800, 256, %s1802, [#allocation3], 128, 128, 8
    $region49: #{seq_model_forward.1} parent=1 // pred_fallthru
      _
    // Predicated region
    $region50: #{seq_model_forward.1} parent=1 // pred_check
      _
    $region51: #{seq_model_forward.1} parent=1 // pred_check_branch
      %1809 = sbr.rel (0) target = $region53
    $region52: #{seq_model_forward.1} parent=1 // pred_region
      %1811 = dma.done [#allocation3], 256
    $region53: #{seq_model_forward.1} parent=1 // pred_fallthru
      _
    %1812 = vsyncpa [#allocation3], 1

</llo_original>
